<compile_context>
chip_gen: v5e
topology: v5e:2x2
jax: 0.10.0
libtpu: 0.0.40
codegen_flags: <defaults>
</compile_context>

<pallas_src>
import jax
import jax.numpy as jnp
from jax import lax
from jax.experimental import pallas as pl
from jax.experimental.pallas import tpu as pltpu

SEQ_LEN = 100      # fixed in the PyTorch forward (for n in range(100))
GROUP = 4          # steps packed per lane-dense output store (4 * O = 128 lanes)
LANE = 128         # f32 lane width
BLK_B = 8          # per-program batch slab = one f32 sublane group
WPAD = 2 * LANE    # padded per-layer gate width: [ r | z | pad | n | pad ]


def _make_kernel(num_layers, hidden_size, output_size, seq_len):
    L, H, O = num_layers, hidden_size, output_size
    B = BLK_B
    G = seq_len // GROUP
    HW = WPAD + LANE * (L - 1)   # block-diag hidden-dot output width

    def kernel(*refs):
        (latent_ref, fc1_w_ref, fc1_b_ref, wi0_ref, bi0_ref,
         whh_ref, bhh_ref) = refs[0:7]
        wf_refs = refs[7:7 + (L - 1)]
        bf_refs = refs[7 + (L - 1):7 + 2 * (L - 1)]
        fc2_w_ref, fc2_b_ref = refs[7 + 2 * (L - 1):9 + 2 * (L - 1)]
        out_ref = refs[9 + 2 * (L - 1)]

        # Hoist (small) pre-broadcast biases out of the decode loop.  The
        # padded weight matrices are NOT hoisted: they are re-read from VMEM
        # inside the loop so regalloc never has to keep ~50 vregs of weights
        # live across the serial recurrence.
        bi0 = jnp.broadcast_to(bi0_ref[...], (B, WPAD))
        bhh = jnp.broadcast_to(bhh_ref[...], (B, HW))
        bf = [jnp.broadcast_to(bf_refs[i][...], (B, WPAD)) for i in range(L - 1)]
        fc2_b = jnp.broadcast_to(fc2_b_ref[...], (B, O))

        # hidden = zeros(L, B, H); hidden[0] = fc1(latent)
        h0 = (jnp.dot(latent_ref[...], fc1_w_ref[...],
                      preferred_element_type=jnp.float32)
              + jnp.broadcast_to(fc1_b_ref[...], (B, H)))
        h_init = tuple([h0] + [jnp.zeros((B, H), jnp.float32)
                               for _ in range(L - 1)])

        # Feedback carried un-normalized: x == p * inv_s.
        # Start token: one-hot at index output_size - 1 (inv_s = 1).
        col = lax.broadcasted_iota(jnp.int32, (B, O), 1)
        p_init = jnp.where(col == O - 1, 1.0, 0.0).astype(jnp.float32)
        inv_s_init = jnp.ones((B, 1), jnp.float32)

        def gru_cell(pre_rz, gi_n, gh_n, h_prev):
            # pre_rz: [B, 2H]  (gi_r+gh_r | gi_z+gh_z), lane offset 0
            # gi_n:   [B, H]   (W_in x + b_in),         lane offset 0
            # gh_n:   [B, H]   (W_hn h + b_hn),         lane offset 0
            rz = jax.nn.sigmoid(pre_rz)          # fused r/z: one EUP dispatch
            r = rz[:, 0:H]
            z = rz[:, H:2 * H]
            nt = jnp.tanh(gi_n + r * gh_n)
            return nt + z * (h_prev - nt)        # == (1 - z) * nt + z * h_prev

        def one_step(p, inv_s, h):
            # ---- off-chain: all layers' hidden-state contributions in ONE
            # block-diagonal matmul, issued at the top of the step.
            h_all = jnp.concatenate(h, axis=-1) if L > 1 else h[0]
            ghh = jnp.dot(h_all, whh_ref[...],
                          preferred_element_type=jnp.float32) + bhh

            h_new = list(h)

            # ---- layer 0: softmax normalization commuted past the dot.
            # softmax(logits) @ W == (exp(logits - m) @ W) * (1/sum) exactly.
            gi0 = (jnp.dot(p, wi0_ref[...], preferred_element_type=jnp.float32)
                   * inv_s + bi0)
            h_new[0] = gru_cell(gi0[:, 0:2 * H] + ghh[:, 0:2 * H],
                                gi0[:, LANE:LANE + H],
                                ghh[:, LANE:LANE + H],
                                h[0])
            x = h_new[0]

            # ---- layers 1..L-1: input and hidden r/z matmuls fused into one
            # dot on concat([x, h[l]]); only gh_n comes from the batched dot.
            for l in range(1, L):
                xh = jnp.concatenate([x, h[l]], axis=-1)           # [B, 2H]
                a = (jnp.dot(xh, wf_refs[l - 1][...],
                             preferred_element_type=jnp.float32) + bf[l - 1])
                base = WPAD + LANE * (l - 1)
                h_new[l] = gru_cell(a[:, 0:2 * H],
                                    a[:, LANE:LANE + H],
                                    ghh[:, base:base + H],
                                    h[l])
                x = h_new[l]

            logits = (jnp.dot(x, fc2_w_ref[...],
                              preferred_element_type=jnp.float32) + fc2_b)

            # Stabilized, commuted softmax feedback: only exp stays on the
            # serial chain; sum + exact reciprocal overlap the next gi0 dot.
            m = jnp.max(logits, axis=-1, keepdims=True)
            p_next = jnp.exp(logits - m)
            s = jnp.sum(p_next, axis=-1, keepdims=True)
            inv_s_next = 1.0 / s
            return p_next, inv_s_next, tuple(h_new), logits

        def group_body(g, carry):
            p, inv_s, h = carry
            chunks = []
            for _ in range(GROUP):               # static unroll-by-4
                p, inv_s, h, logits = one_step(p, inv_s, h)
                chunks.append(logits)
            # lane-dense [B, GROUP*O] = [8, 128] store, one per 4 steps
            out_ref[g] = jnp.concatenate(chunks, axis=-1)
            return (p, inv_s, h)

        lax.fori_loop(0, G, group_body, (p_init, inv_s_init, h_init))

    return kernel


def _pack_gate_cols(w_r, w_z, w_n, hidden_size):
    """[in, H] x3 -> [in, WPAD] with r@0, z@H, n@LANE (padded gate layout)."""
    H = hidden_size
    rows = w_r.shape[0]
    out = jnp.zeros((rows, WPAD), jnp.float32)
    out = out.at[:, 0:H].set(w_r)
    out = out.at[:, H:2 * H].set(w_z)
    out = out.at[:, LANE:LANE + H].set(w_n)
    return out


def gru_decoder_forward(latent, params, *, num_layers, hidden_size, output_size,
                        seq_len=SEQ_LEN):
    """Pallas implementation of GRUDecoder.forward (inference path).

    latent: [B, encoding_size] float32
    returns: [B, seq_len, output_size] float32 (pre-softmax logits, as PyTorch)
    """
    L, H, O = num_layers, hidden_size, output_size
    assert seq_len % GROUP == 0
    assert 2 * H <= LANE and O <= LANE and GROUP * O <= LANE
    B = latent.shape[0]
    E = latent.shape[1]
    B_pad = max(BLK_B, ((B + BLK_B - 1) // BLK_B) * BLK_B)
    G = seq_len // GROUP
    HW = WPAD + LANE * (L - 1)

    # zero-pad batch to a multiple of the 8-row slab
    latent_pad = jnp.zeros((B_pad, E), jnp.float32).at[:B].set(latent)

    layers = params["layers"]
    p0 = layers[0]

    # layer-0 input weight / bias (padded gate layout); b_hr/b_hz folded in
    wi0 = _pack_gate_cols(p0["w_ir"], p0["w_iz"], p0["w_in"], H)
    bi0 = jnp.zeros((1, WPAD), jnp.float32)
    bi0 = bi0.at[:, 0:H].set(p0["b_ir"] + p0["b_hr"])
    bi0 = bi0.at[:, H:2 * H].set(p0["b_iz"] + p0["b_hz"])
    bi0 = bi0.at[:, LANE:LANE + H].set(p0["b_in"])

    # block-diagonal hidden-only weight: layer-0 full (r,z,n), layers>=1 n only
    whh = jnp.zeros((L * H, HW), jnp.float32)
    whh = whh.at[0:H, 0:H].set(p0["w_hr"])
    whh = whh.at[0:H, H:2 * H].set(p0["w_hz"])
    whh = whh.at[0:H, LANE:LANE + H].set(p0["w_hn"])
    bhh = jnp.zeros((1, HW), jnp.float32)
    bhh = bhh.at[:, LANE:LANE + H].set(p0["b_hn"])

    wfs, bfs = [], []
    for l in range(1, L):
        lp = layers[l]
        base = WPAD + LANE * (l - 1)
        whh = whh.at[l * H:(l + 1) * H, base:base + H].set(lp["w_hn"])
        bhh = bhh.at[:, base:base + H].set(lp["b_hn"])
        # fused [x; h] weight for r/z (+ input part of n)
        wf = jnp.zeros((2 * H, WPAD), jnp.float32)
        wf = wf.at[0:H, 0:H].set(lp["w_ir"])
        wf = wf.at[0:H, H:2 * H].set(lp["w_iz"])
        wf = wf.at[0:H, LANE:LANE + H].set(lp["w_in"])
        wf = wf.at[H:2 * H, 0:H].set(lp["w_hr"])
        wf = wf.at[H:2 * H, H:2 * H].set(lp["w_hz"])
        bf = jnp.zeros((1, WPAD), jnp.float32)
        bf = bf.at[:, 0:H].set(lp["b_ir"] + lp["b_hr"])
        bf = bf.at[:, H:2 * H].set(lp["b_iz"] + lp["b_hz"])
        bf = bf.at[:, LANE:LANE + H].set(lp["b_in"])
        wfs.append(wf)
        bfs.append(bf)

    flat_inputs = ([latent_pad, params["fc1_w"], params["fc1_b"], wi0, bi0,
                    whh, bhh] + wfs + bfs + [params["fc2_w"], params["fc2_b"]])

    kernel = _make_kernel(L, H, O, seq_len)

    in_specs = [pl.BlockSpec((BLK_B, E), lambda b: (b, 0))]
    in_specs += [pl.BlockSpec(x.shape, lambda b: (0, 0)) for x in flat_inputs[1:]]
    out_spec = pl.BlockSpec((G, BLK_B, GROUP * O), lambda b: (0, b, 0))

    out_packed = pl.pallas_call(
        kernel,
        out_shape=jax.ShapeDtypeStruct((G, B_pad, GROUP * O), jnp.float32),
        grid=(B_pad // BLK_B,),
        in_specs=in_specs,
        out_specs=out_spec,
        compiler_params=pltpu.CompilerParams(
            dimension_semantics=("parallel",)),
    )(*flat_inputs)

    # [G, B_pad, GROUP*O] -> [B, seq_len, O] (match torch.cat(outputs, dim=1))
    out = out_packed.reshape(G, B_pad, GROUP, O)
    out = jnp.transpose(out, (1, 0, 2, 3)).reshape(B_pad, seq_len, O)
    return out[:B]


def init_params(key, encoding_size, hidden_size, output_size, num_layers):
    """Deterministic synthetic parameters (shapes match nn.GRU / nn.Linear)."""
    n_keys = 4 + 12 * num_layers
    keys = iter(jax.random.split(key, n_keys))

    def rnd(shape, scale=0.15):
        return jax.random.normal(next(keys), shape, dtype=jnp.float32) * scale

    params = {
        "fc1_w": rnd((encoding_size, hidden_size)),
        "fc1_b": rnd((1, hidden_size)),
        "layers": [],
        "fc2_w": rnd((hidden_size, output_size)),
        "fc2_b": rnd((1, output_size)),
    }
    for l in range(num_layers):
        in_dim = output_size if l == 0 else hidden_size  # input_size == output_size
        layer = {}
        for g in ("r", "z", "n"):
            layer[f"w_i{g}"] = rnd((in_dim, hidden_size))
            layer[f"w_h{g}"] = rnd((hidden_size, hidden_size))
            layer[f"b_i{g}"] = rnd((1, hidden_size))
            layer[f"b_h{g}"] = rnd((1, hidden_size))
        params["layers"].append(layer)
    return params


def reference_forward(latent, params, *, num_layers, hidden_size, output_size,
                      seq_len=SEQ_LEN):
    """Pure-JAX reference mirroring the PyTorch forward (no teacher forcing)."""
    B = latent.shape[0]
    h = [jnp.zeros((B, hidden_size), jnp.float32) for _ in range(num_layers)]
    h[0] = latent @ params["fc1_w"] + params["fc1_b"]

    x = jnp.zeros((B, output_size), jnp.float32).at[:, output_size - 1].set(1.0)
    outputs = []
    for _ in range(seq_len):
        inp = x
        for l in range(num_layers):
            p = params["layers"][l]
            gi_r = inp @ p["w_ir"] + p["b_ir"]
            gi_z = inp @ p["w_iz"] + p["b_iz"]
            gi_n = inp @ p["w_in"] + p["b_in"]
            gh_r = h[l] @ p["w_hr"] + p["b_hr"]
            gh_z = h[l] @ p["w_hz"] + p["b_hz"]
            gh_n = h[l] @ p["w_hn"] + p["b_hn"]
            r = jax.nn.sigmoid(gi_r + gh_r)
            z = jax.nn.sigmoid(gi_z + gh_z)
            nt = jnp.tanh(gi_n + r * gh_n)
            h[l] = (1.0 - z) * nt + z * h[l]
            inp = h[l]
        logits = inp @ params["fc2_w"] + params["fc2_b"]
        outputs.append(logits[:, None, :])
        x = jax.nn.softmax(logits, axis=-1)
    return jnp.concatenate(outputs, axis=1)


if __name__ == "__main__":
    # small, GRU-decoder-consistent shapes
    batch_size = 2
    encoding_size = 16
    hidden_size = 32
    output_size = 32        # alphabet size; must equal GRU input_size (feedback)
    num_layers = 2

    key = jax.random.PRNGKey(0)
    k_lat, k_par = jax.random.split(key)
    latent = jax.random.normal(k_lat, (batch_size, encoding_size), jnp.float32)
    params = init_params(k_par, encoding_size, hidden_size, output_size, num_layers)

    out = gru_decoder_forward(latent, params,
                              num_layers=num_layers,
                              hidden_size=hidden_size,
                              output_size=output_size)
    out = jax.block_until_ready(out)

    assert out.shape == (batch_size, SEQ_LEN, output_size), out.shape
    assert bool(jnp.all(jnp.isfinite(out)))

    ref = reference_forward(latent, params,
                            num_layers=num_layers,
                            hidden_size=hidden_size,
                            output_size=output_size)
    max_err = float(jnp.max(jnp.abs(out - ref)))
    assert max_err < 5e-2, f"max abs error too large: {max_err}"

    print("KERNEL_OK")
</pallas_src>

<mosaic_0001>
module attributes {stable_mosaic.version = 11 : i64} {
  func.func @kernel(%arg0: i32, %arg1: memref<8x16xf32, #tpu.memory_space<vmem>>, %arg2: memref<16x32xf32, #tpu.memory_space<vmem>>, %arg3: memref<1x32xf32, #tpu.memory_space<vmem>>, %arg4: memref<32x256xf32, #tpu.memory_space<vmem>>, %arg5: memref<1x256xf32, #tpu.memory_space<vmem>>, %arg6: memref<64x384xf32, #tpu.memory_space<vmem>>, %arg7: memref<1x384xf32, #tpu.memory_space<vmem>>, %arg8: memref<64x256xf32, #tpu.memory_space<vmem>>, %arg9: memref<1x256xf32, #tpu.memory_space<vmem>>, %arg10: memref<32x32xf32, #tpu.memory_space<vmem>>, %arg11: memref<1x32xf32, #tpu.memory_space<vmem>>, %arg12: memref<25x8x128xf32, #tpu.memory_space<vmem>>) attributes {dimension_semantics = [#tpu.dimension_semantics<parallel>], iteration_bounds = array<i64: 1>, scalar_prefetch = 0 : i64, scratch_operands = 0 : i64, tpu.core_type = #tpu.core_type<tc>, window_params = [{transform_indices = @transform_0, window_bounds = array<i64: 8, 16>}, {pipeline_mode = #tpu.pipeline_mode<synchronous>, transform_indices = @transform_1, window_bounds = array<i64: 16, 32>}, {pipeline_mode = #tpu.pipeline_mode<synchronous>, transform_indices = @transform_2, window_bounds = array<i64: 1, 32>}, {pipeline_mode = #tpu.pipeline_mode<synchronous>, transform_indices = @transform_3, window_bounds = array<i64: 32, 256>}, {pipeline_mode = #tpu.pipeline_mode<synchronous>, transform_indices = @transform_4, window_bounds = array<i64: 1, 256>}, {pipeline_mode = #tpu.pipeline_mode<synchronous>, transform_indices = @transform_5, window_bounds = array<i64: 64, 384>}, {pipeline_mode = #tpu.pipeline_mode<synchronous>, transform_indices = @transform_6, window_bounds = array<i64: 1, 384>}, {pipeline_mode = #tpu.pipeline_mode<synchronous>, transform_indices = @transform_7, window_bounds = array<i64: 64, 256>}, {pipeline_mode = #tpu.pipeline_mode<synchronous>, transform_indices = @transform_8, window_bounds = array<i64: 1, 256>}, {pipeline_mode = #tpu.pipeline_mode<synchronous>, transform_indices = @transform_9, window_bounds = array<i64: 32, 32>}, {pipeline_mode = #tpu.pipeline_mode<synchronous>, transform_indices = @transform_10, window_bounds = array<i64: 1, 32>}, {transform_indices = @transform_11, window_bounds = array<i64: 25, 8, 128>}]} {
    %c0 = arith.constant 0 : index
    %c0_0 = arith.constant 0 : index
    %0 = vector.load %arg5[%c0, %c0_0] : memref<1x256xf32, #tpu.memory_space<vmem>>, vector<1x256xf32>
    %1 = vector.shape_cast %0 : vector<1x256xf32> to vector<1x256xf32>
    %2 = vector.broadcast %1 : vector<1x256xf32> to vector<8x256xf32>
    %c0_1 = arith.constant 0 : index
    %c0_2 = arith.constant 0 : index
    %3 = vector.load %arg7[%c0_1, %c0_2] : memref<1x384xf32, #tpu.memory_space<vmem>>, vector<1x384xf32>
    %4 = vector.shape_cast %3 : vector<1x384xf32> to vector<1x384xf32>
    %5 = vector.broadcast %4 : vector<1x384xf32> to vector<8x384xf32>
    %c0_3 = arith.constant 0 : index
    %c0_4 = arith.constant 0 : index
    %6 = vector.load %arg9[%c0_3, %c0_4] : memref<1x256xf32, #tpu.memory_space<vmem>>, vector<1x256xf32>
    %7 = vector.shape_cast %6 : vector<1x256xf32> to vector<1x256xf32>
    %8 = vector.broadcast %7 : vector<1x256xf32> to vector<8x256xf32>
    %c0_5 = arith.constant 0 : index
    %c0_6 = arith.constant 0 : index
    %9 = vector.load %arg11[%c0_5, %c0_6] : memref<1x32xf32, #tpu.memory_space<vmem>>, vector<1x32xf32>
    %10 = vector.shape_cast %9 : vector<1x32xf32> to vector<1x32xf32>
    %11 = vector.broadcast %10 : vector<1x32xf32> to vector<8x32xf32>
    %c0_7 = arith.constant 0 : index
    %c0_8 = arith.constant 0 : index
    %12 = vector.load %arg1[%c0_7, %c0_8] : memref<8x16xf32, #tpu.memory_space<vmem>>, vector<8x16xf32>
    %c0_9 = arith.constant 0 : index
    %c0_10 = arith.constant 0 : index
    %13 = vector.load %arg2[%c0_9, %c0_10] : memref<16x32xf32, #tpu.memory_space<vmem>>, vector<16x32xf32>
    %cst = arith.constant dense<0.000000e+00> : vector<8x32xf32>
    %14 = tpu.matmul %12, %13, %cst {dimension_numbers = #tpu.dot_dimension_numbers<[1], [0], [0], [1], [0, 0, 1, 1], [], []>} : vector<8x16xf32>, vector<16x32xf32>, vector<8x32xf32> -> vector<8x32xf32>
    %c0_11 = arith.constant 0 : index
    %c0_12 = arith.constant 0 : index
    %15 = vector.load %arg3[%c0_11, %c0_12] : memref<1x32xf32, #tpu.memory_space<vmem>>, vector<1x32xf32>
    %16 = vector.shape_cast %15 : vector<1x32xf32> to vector<1x32xf32>
    %17 = vector.broadcast %16 : vector<1x32xf32> to vector<8x32xf32>
    %18 = arith.addf %14, %17 : vector<8x32xf32>
    %cst_13 = arith.constant 0.000000e+00 : f32
    %19 = vector.broadcast %cst_13 : f32 to vector<8x32xf32>
    %20 = tpu.iota {dimensions = array<i32: 1>} : vector<8x32xi32>
    %c31_i32 = arith.constant 31 : i32
    %21 = vector.broadcast %c31_i32 : i32 to vector<8x32xi32>
    %22 = arith.cmpi eq, %20, %21 : vector<8x32xi32>
    %cst_14 = arith.constant 1.000000e+00 : f32
    %cst_15 = arith.constant 0.000000e+00 : f32
    %23 = vector.broadcast %cst_14 : f32 to vector<8x32xf32>
    %24 = vector.broadcast %cst_15 : f32 to vector<8x32xf32>
    %25 = arith.select %22, %23, %24 : vector<8x32xi1>, vector<8x32xf32>
    %cst_16 = arith.constant 1.000000e+00 : f32
    %26 = vector.broadcast %cst_16 : f32 to vector<8x1xf32>
    %c0_i32 = arith.constant 0 : i32
    %c25_i32 = arith.constant 25 : i32
    %27 = arith.addi %c0_i32, %c25_i32 : i32
    %c1_i32 = arith.constant 1 : i32
    %28:4 = scf.for %arg13 = %c0_i32 to %27 step %c1_i32 iter_args(%arg14 = %25, %arg15 = %26, %arg16 = %18, %arg17 = %19) -> (vector<8x32xf32>, vector<8x1xf32>, vector<8x32xf32>, vector<8x32xf32>)  : i32 {
      %29 = tpu.concatenate %arg16, %arg17 in 1 : vector<8x32xf32>, vector<8x32xf32> -> vector<8x64xf32>
      %c0_18 = arith.constant 0 : index
      %c0_19 = arith.constant 0 : index
      %30 = vector.load %arg6[%c0_18, %c0_19] : memref<64x384xf32, #tpu.memory_space<vmem>>, vector<64x384xf32>
      %cst_20 = arith.constant dense<0.000000e+00> : vector<8x384xf32>
      %31 = tpu.matmul %29, %30, %cst_20 {dimension_numbers = #tpu.dot_dimension_numbers<[1], [0], [0], [1], [0, 0, 1, 1], [], []>} : vector<8x64xf32>, vector<64x384xf32>, vector<8x384xf32> -> vector<8x384xf32>
      %32 = arith.addf %31, %5 : vector<8x384xf32>
      %c0_21 = arith.constant 0 : index
      %c0_22 = arith.constant 0 : index
      %33 = vector.load %arg4[%c0_21, %c0_22] : memref<32x256xf32, #tpu.memory_space<vmem>>, vector<32x256xf32>
      %cst_23 = arith.constant dense<0.000000e+00> : vector<8x256xf32>
      %34 = tpu.matmul %arg14, %33, %cst_23 {dimension_numbers = #tpu.dot_dimension_numbers<[1], [0], [0], [1], [0, 0, 1, 1], [], []>} : vector<8x32xf32>, vector<32x256xf32>, vector<8x256xf32> -> vector<8x256xf32>
      %35 = vector.broadcast %arg15 : vector<8x1xf32> to vector<8x256xf32>
      %36 = arith.mulf %34, %35 : vector<8x256xf32>
      %37 = arith.addf %36, %2 : vector<8x256xf32>
      %38 = vector.extract_strided_slice %37 {offsets = [0, 0], sizes = [8, 64], strides = [1, 1]} : vector<8x256xf32> to vector<8x64xf32>
      %39 = vector.extract_strided_slice %32 {offsets = [0, 0], sizes = [8, 64], strides = [1, 1]} : vector<8x384xf32> to vector<8x64xf32>
      %40 = arith.addf %38, %39 : vector<8x64xf32>
      %41 = vector.extract_strided_slice %37 {offsets = [0, 128], sizes = [8, 32], strides = [1, 1]} : vector<8x256xf32> to vector<8x32xf32>
      %42 = vector.extract_strided_slice %32 {offsets = [0, 128], sizes = [8, 32], strides = [1, 1]} : vector<8x384xf32> to vector<8x32xf32>
      %43 = arith.negf %40 : vector<8x64xf32>
      %44 = math.exp %43 : vector<8x64xf32>
      %cst_24 = arith.constant 1.000000e+00 : f32
      %45 = vector.broadcast %cst_24 : f32 to vector<8x64xf32>
      %46 = arith.addf %45, %44 : vector<8x64xf32>
      %47 = arith.divf %45, %46 : vector<8x64xf32>
      %48 = vector.extract_strided_slice %47 {offsets = [0, 0], sizes = [8, 32], strides = [1, 1]} : vector<8x64xf32> to vector<8x32xf32>
      %49 = vector.extract_strided_slice %47 {offsets = [0, 32], sizes = [8, 32], strides = [1, 1]} : vector<8x64xf32> to vector<8x32xf32>
      %50 = arith.mulf %48, %42 : vector<8x32xf32>
      %51 = arith.addf %41, %50 : vector<8x32xf32>
      %52 = math.tanh %51 : vector<8x32xf32>
      %53 = arith.subf %arg16, %52 : vector<8x32xf32>
      %54 = arith.mulf %49, %53 : vector<8x32xf32>
      %55 = arith.addf %52, %54 : vector<8x32xf32>
      %56 = tpu.concatenate %55, %arg17 in 1 : vector<8x32xf32>, vector<8x32xf32> -> vector<8x64xf32>
      %c0_25 = arith.constant 0 : index
      %c0_26 = arith.constant 0 : index
      %57 = vector.load %arg8[%c0_25, %c0_26] : memref<64x256xf32, #tpu.memory_space<vmem>>, vector<64x256xf32>
      %cst_27 = arith.constant dense<0.000000e+00> : vector<8x256xf32>
      %58 = tpu.matmul %56, %57, %cst_27 {dimension_numbers = #tpu.dot_dimension_numbers<[1], [0], [0], [1], [0, 0, 1, 1], [], []>} : vector<8x64xf32>, vector<64x256xf32>, vector<8x256xf32> -> vector<8x256xf32>
      %59 = arith.addf %58, %8 : vector<8x256xf32>
      %60 = vector.extract_strided_slice %59 {offsets = [0, 0], sizes = [8, 64], strides = [1, 1]} : vector<8x256xf32> to vector<8x64xf32>
      %61 = vector.extract_strided_slice %59 {offsets = [0, 128], sizes = [8, 32], strides = [1, 1]} : vector<8x256xf32> to vector<8x32xf32>
      %62 = vector.extract_strided_slice %32 {offsets = [0, 256], sizes = [8, 32], strides = [1, 1]} : vector<8x384xf32> to vector<8x32xf32>
      %63 = arith.negf %60 : vector<8x64xf32>
      %64 = math.exp %63 : vector<8x64xf32>
      %cst_28 = arith.constant 1.000000e+00 : f32
      %65 = vector.broadcast %cst_28 : f32 to vector<8x64xf32>
      %66 = arith.addf %65, %64 : vector<8x64xf32>
      %67 = arith.divf %65, %66 : vector<8x64xf32>
      %68 = vector.extract_strided_slice %67 {offsets = [0, 0], sizes = [8, 32], strides = [1, 1]} : vector<8x64xf32> to vector<8x32xf32>
      %69 = vector.extract_strided_slice %67 {offsets = [0, 32], sizes = [8, 32], strides = [1, 1]} : vector<8x64xf32> to vector<8x32xf32>
      %70 = arith.mulf %68, %62 : vector<8x32xf32>
      %71 = arith.addf %61, %70 : vector<8x32xf32>
      %72 = math.tanh %71 : vector<8x32xf32>
      %73 = arith.subf %arg17, %72 : vector<8x32xf32>
      %74 = arith.mulf %69, %73 : vector<8x32xf32>
      %75 = arith.addf %72, %74 : vector<8x32xf32>
      %c0_29 = arith.constant 0 : index
      %c0_30 = arith.constant 0 : index
      %76 = vector.load %arg10[%c0_29, %c0_30] : memref<32x32xf32, #tpu.memory_space<vmem>>, vector<32x32xf32>
      %cst_31 = arith.constant dense<0.000000e+00> : vector<8x32xf32>
      %77 = tpu.matmul %75, %76, %cst_31 {dimension_numbers = #tpu.dot_dimension_numbers<[1], [0], [0], [1], [0, 0, 1, 1], [], []>} : vector<8x32xf32>, vector<32x32xf32>, vector<8x32xf32> -> vector<8x32xf32>
      %78 = arith.addf %77, %11 : vector<8x32xf32>
      %cst_32 = arith.constant dense<0xFF800000> : vector<8xf32>
      %79 = vector.multi_reduction <maximumf>, %78, %cst_32 [1] : vector<8x32xf32> to vector<8xf32>
      %80 = vector.shape_cast %79 : vector<8xf32> to vector<8x1xf32>
      %81 = vector.broadcast %80 : vector<8x1xf32> to vector<8x32xf32>
      %82 = arith.subf %78, %81 : vector<8x32xf32>
      %83 = math.exp %82 : vector<8x32xf32>
      %cst_33 = arith.constant dense<0.000000e+00> : vector<8xf32>
      %84 = vector.multi_reduction <add>, %83, %cst_33 [1] : vector<8x32xf32> to vector<8xf32>
      %85 = vector.shape_cast %84 : vector<8xf32> to vector<8x1xf32>
      %cst_34 = arith.constant 1.000000e+00 : f32
      %86 = vector.broadcast %cst_34 : f32 to vector<8x1xf32>
      %87 = arith.divf %86, %85 : vector<8x1xf32>
      %88 = tpu.concatenate %55, %75 in 1 : vector<8x32xf32>, vector<8x32xf32> -> vector<8x64xf32>
      %c0_35 = arith.constant 0 : index
      %c0_36 = arith.constant 0 : index
      %89 = vector.load %arg6[%c0_35, %c0_36] : memref<64x384xf32, #tpu.memory_space<vmem>>, vector<64x384xf32>
      %cst_37 = arith.constant dense<0.000000e+00> : vector<8x384xf32>
      %90 = tpu.matmul %88, %89, %cst_37 {dimension_numbers = #tpu.dot_dimension_numbers<[1], [0], [0], [1], [0, 0, 1, 1], [], []>} : vector<8x64xf32>, vector<64x384xf32>, vector<8x384xf32> -> vector<8x384xf32>
      %91 = arith.addf %90, %5 : vector<8x384xf32>
      %c0_38 = arith.constant 0 : index
      %c0_39 = arith.constant 0 : index
      %92 = vector.load %arg4[%c0_38, %c0_39] : memref<32x256xf32, #tpu.memory_space<vmem>>, vector<32x256xf32>
      %cst_40 = arith.constant dense<0.000000e+00> : vector<8x256xf32>
      %93 = tpu.matmul %83, %92, %cst_40 {dimension_numbers = #tpu.dot_dimension_numbers<[1], [0], [0], [1], [0, 0, 1, 1], [], []>} : vector<8x32xf32>, vector<32x256xf32>, vector<8x256xf32> -> vector<8x256xf32>
      %94 = vector.broadcast %87 : vector<8x1xf32> to vector<8x256xf32>
      %95 = arith.mulf %93, %94 : vector<8x256xf32>
      %96 = arith.addf %95, %2 : vector<8x256xf32>
      %97 = vector.extract_strided_slice %96 {offsets = [0, 0], sizes = [8, 64], strides = [1, 1]} : vector<8x256xf32> to vector<8x64xf32>
      %98 = vector.extract_strided_slice %91 {offsets = [0, 0], sizes = [8, 64], strides = [1, 1]} : vector<8x384xf32> to vector<8x64xf32>
      %99 = arith.addf %97, %98 : vector<8x64xf32>
      %100 = vector.extract_strided_slice %96 {offsets = [0, 128], sizes = [8, 32], strides = [1, 1]} : vector<8x256xf32> to vector<8x32xf32>
      %101 = vector.extract_strided_slice %91 {offsets = [0, 128], sizes = [8, 32], strides = [1, 1]} : vector<8x384xf32> to vector<8x32xf32>
      %102 = arith.negf %99 : vector<8x64xf32>
      %103 = math.exp %102 : vector<8x64xf32>
      %cst_41 = arith.constant 1.000000e+00 : f32
      %104 = vector.broadcast %cst_41 : f32 to vector<8x64xf32>
      %105 = arith.addf %104, %103 : vector<8x64xf32>
      %106 = arith.divf %104, %105 : vector<8x64xf32>
      %107 = vector.extract_strided_slice %106 {offsets = [0, 0], sizes = [8, 32], strides = [1, 1]} : vector<8x64xf32> to vector<8x32xf32>
      %108 = vector.extract_strided_slice %106 {offsets = [0, 32], sizes = [8, 32], strides = [1, 1]} : vector<8x64xf32> to vector<8x32xf32>
      %109 = arith.mulf %107, %101 : vector<8x32xf32>
      %110 = arith.addf %100, %109 : vector<8x32xf32>
      %111 = math.tanh %110 : vector<8x32xf32>
      %112 = arith.subf %55, %111 : vector<8x32xf32>
      %113 = arith.mulf %108, %112 : vector<8x32xf32>
      %114 = arith.addf %111, %113 : vector<8x32xf32>
      %115 = tpu.concatenate %114, %75 in 1 : vector<8x32xf32>, vector<8x32xf32> -> vector<8x64xf32>
      %c0_42 = arith.constant 0 : index
      %c0_43 = arith.constant 0 : index
      %116 = vector.load %arg8[%c0_42, %c0_43] : memref<64x256xf32, #tpu.memory_space<vmem>>, vector<64x256xf32>
      %cst_44 = arith.constant dense<0.000000e+00> : vector<8x256xf32>
      %117 = tpu.matmul %115, %116, %cst_44 {dimension_numbers = #tpu.dot_dimension_numbers<[1], [0], [0], [1], [0, 0, 1, 1], [], []>} : vector<8x64xf32>, vector<64x256xf32>, vector<8x256xf32> -> vector<8x256xf32>
      %118 = arith.addf %117, %8 : vector<8x256xf32>
      %119 = vector.extract_strided_slice %118 {offsets = [0, 0], sizes = [8, 64], strides = [1, 1]} : vector<8x256xf32> to vector<8x64xf32>
      %120 = vector.extract_strided_slice %118 {offsets = [0, 128], sizes = [8, 32], strides = [1, 1]} : vector<8x256xf32> to vector<8x32xf32>
      %121 = vector.extract_strided_slice %91 {offsets = [0, 256], sizes = [8, 32], strides = [1, 1]} : vector<8x384xf32> to vector<8x32xf32>
      %122 = arith.negf %119 : vector<8x64xf32>
      %123 = math.exp %122 : vector<8x64xf32>
      %cst_45 = arith.constant 1.000000e+00 : f32
      %124 = vector.broadcast %cst_45 : f32 to vector<8x64xf32>
      %125 = arith.addf %124, %123 : vector<8x64xf32>
      %126 = arith.divf %124, %125 : vector<8x64xf32>
      %127 = vector.extract_strided_slice %126 {offsets = [0, 0], sizes = [8, 32], strides = [1, 1]} : vector<8x64xf32> to vector<8x32xf32>
      %128 = vector.extract_strided_slice %126 {offsets = [0, 32], sizes = [8, 32], strides = [1, 1]} : vector<8x64xf32> to vector<8x32xf32>
      %129 = arith.mulf %127, %121 : vector<8x32xf32>
      %130 = arith.addf %120, %129 : vector<8x32xf32>
      %131 = math.tanh %130 : vector<8x32xf32>
      %132 = arith.subf %75, %131 : vector<8x32xf32>
      %133 = arith.mulf %128, %132 : vector<8x32xf32>
      %134 = arith.addf %131, %133 : vector<8x32xf32>
      %c0_46 = arith.constant 0 : index
      %c0_47 = arith.constant 0 : index
      %135 = vector.load %arg10[%c0_46, %c0_47] : memref<32x32xf32, #tpu.memory_space<vmem>>, vector<32x32xf32>
      %cst_48 = arith.constant dense<0.000000e+00> : vector<8x32xf32>
      %136 = tpu.matmul %134, %135, %cst_48 {dimension_numbers = #tpu.dot_dimension_numbers<[1], [0], [0], [1], [0, 0, 1, 1], [], []>} : vector<8x32xf32>, vector<32x32xf32>, vector<8x32xf32> -> vector<8x32xf32>
      %137 = arith.addf %136, %11 : vector<8x32xf32>
      %cst_49 = arith.constant dense<0xFF800000> : vector<8xf32>
      %138 = vector.multi_reduction <maximumf>, %137, %cst_49 [1] : vector<8x32xf32> to vector<8xf32>
      %139 = vector.shape_cast %138 : vector<8xf32> to vector<8x1xf32>
      %140 = vector.broadcast %139 : vector<8x1xf32> to vector<8x32xf32>
      %141 = arith.subf %137, %140 : vector<8x32xf32>
      %142 = math.exp %141 : vector<8x32xf32>
      %cst_50 = arith.constant dense<0.000000e+00> : vector<8xf32>
      %143 = vector.multi_reduction <add>, %142, %cst_50 [1] : vector<8x32xf32> to vector<8xf32>
      %144 = vector.shape_cast %143 : vector<8xf32> to vector<8x1xf32>
      %cst_51 = arith.constant 1.000000e+00 : f32
      %145 = vector.broadcast %cst_51 : f32 to vector<8x1xf32>
      %146 = arith.divf %145, %144 : vector<8x1xf32>
      %147 = tpu.concatenate %114, %134 in 1 : vector<8x32xf32>, vector<8x32xf32> -> vector<8x64xf32>
      %c0_52 = arith.constant 0 : index
      %c0_53 = arith.constant 0 : index
      %148 = vector.load %arg6[%c0_52, %c0_53] : memref<64x384xf32, #tpu.memory_space<vmem>>, vector<64x384xf32>
      %cst_54 = arith.constant dense<0.000000e+00> : vector<8x384xf32>
      %149 = tpu.matmul %147, %148, %cst_54 {dimension_numbers = #tpu.dot_dimension_numbers<[1], [0], [0], [1], [0, 0, 1, 1], [], []>} : vector<8x64xf32>, vector<64x384xf32>, vector<8x384xf32> -> vector<8x384xf32>
      %150 = arith.addf %149, %5 : vector<8x384xf32>
      %c0_55 = arith.constant 0 : index
      %c0_56 = arith.constant 0 : index
      %151 = vector.load %arg4[%c0_55, %c0_56] : memref<32x256xf32, #tpu.memory_space<vmem>>, vector<32x256xf32>
      %cst_57 = arith.constant dense<0.000000e+00> : vector<8x256xf32>
      %152 = tpu.matmul %142, %151, %cst_57 {dimension_numbers = #tpu.dot_dimension_numbers<[1], [0], [0], [1], [0, 0, 1, 1], [], []>} : vector<8x32xf32>, vector<32x256xf32>, vector<8x256xf32> -> vector<8x256xf32>
      %153 = vector.broadcast %146 : vector<8x1xf32> to vector<8x256xf32>
      %154 = arith.mulf %152, %153 : vector<8x256xf32>
      %155 = arith.addf %154, %2 : vector<8x256xf32>
      %156 = vector.extract_strided_slice %155 {offsets = [0, 0], sizes = [8, 64], strides = [1, 1]} : vector<8x256xf32> to vector<8x64xf32>
      %157 = vector.extract_strided_slice %150 {offsets = [0, 0], sizes = [8, 64], strides = [1, 1]} : vector<8x384xf32> to vector<8x64xf32>
      %158 = arith.addf %156, %157 : vector<8x64xf32>
      %159 = vector.extract_strided_slice %155 {offsets = [0, 128], sizes = [8, 32], strides = [1, 1]} : vector<8x256xf32> to vector<8x32xf32>
      %160 = vector.extract_strided_slice %150 {offsets = [0, 128], sizes = [8, 32], strides = [1, 1]} : vector<8x384xf32> to vector<8x32xf32>
      %161 = arith.negf %158 : vector<8x64xf32>
      %162 = math.exp %161 : vector<8x64xf32>
      %cst_58 = arith.constant 1.000000e+00 : f32
      %163 = vector.broadcast %cst_58 : f32 to vector<8x64xf32>
      %164 = arith.addf %163, %162 : vector<8x64xf32>
      %165 = arith.divf %163, %164 : vector<8x64xf32>
      %166 = vector.extract_strided_slice %165 {offsets = [0, 0], sizes = [8, 32], strides = [1, 1]} : vector<8x64xf32> to vector<8x32xf32>
      %167 = vector.extract_strided_slice %165 {offsets = [0, 32], sizes = [8, 32], strides = [1, 1]} : vector<8x64xf32> to vector<8x32xf32>
      %168 = arith.mulf %166, %160 : vector<8x32xf32>
      %169 = arith.addf %159, %168 : vector<8x32xf32>
      %170 = math.tanh %169 : vector<8x32xf32>
      %171 = arith.subf %114, %170 : vector<8x32xf32>
      %172 = arith.mulf %167, %171 : vector<8x32xf32>
      %173 = arith.addf %170, %172 : vector<8x32xf32>
      %174 = tpu.concatenate %173, %134 in 1 : vector<8x32xf32>, vector<8x32xf32> -> vector<8x64xf32>
      %c0_59 = arith.constant 0 : index
      %c0_60 = arith.constant 0 : index
      %175 = vector.load %arg8[%c0_59, %c0_60] : memref<64x256xf32, #tpu.memory_space<vmem>>, vector<64x256xf32>
      %cst_61 = arith.constant dense<0.000000e+00> : vector<8x256xf32>
      %176 = tpu.matmul %174, %175, %cst_61 {dimension_numbers = #tpu.dot_dimension_numbers<[1], [0], [0], [1], [0, 0, 1, 1], [], []>} : vector<8x64xf32>, vector<64x256xf32>, vector<8x256xf32> -> vector<8x256xf32>
      %177 = arith.addf %176, %8 : vector<8x256xf32>
      %178 = vector.extract_strided_slice %177 {offsets = [0, 0], sizes = [8, 64], strides = [1, 1]} : vector<8x256xf32> to vector<8x64xf32>
      %179 = vector.extract_strided_slice %177 {offsets = [0, 128], sizes = [8, 32], strides = [1, 1]} : vector<8x256xf32> to vector<8x32xf32>
      %180 = vector.extract_strided_slice %150 {offsets = [0, 256], sizes = [8, 32], strides = [1, 1]} : vector<8x384xf32> to vector<8x32xf32>
      %181 = arith.negf %178 : vector<8x64xf32>
      %182 = math.exp %181 : vector<8x64xf32>
      %cst_62 = arith.constant 1.000000e+00 : f32
      %183 = vector.broadcast %cst_62 : f32 to vector<8x64xf32>
      %184 = arith.addf %183, %182 : vector<8x64xf32>
      %185 = arith.divf %183, %184 : vector<8x64xf32>
      %186 = vector.extract_strided_slice %185 {offsets = [0, 0], sizes = [8, 32], strides = [1, 1]} : vector<8x64xf32> to vector<8x32xf32>
      %187 = vector.extract_strided_slice %185 {offsets = [0, 32], sizes = [8, 32], strides = [1, 1]} : vector<8x64xf32> to vector<8x32xf32>
      %188 = arith.mulf %186, %180 : vector<8x32xf32>
      %189 = arith.addf %179, %188 : vector<8x32xf32>
      %190 = math.tanh %189 : vector<8x32xf32>
      %191 = arith.subf %134, %190 : vector<8x32xf32>
      %192 = arith.mulf %187, %191 : vector<8x32xf32>
      %193 = arith.addf %190, %192 : vector<8x32xf32>
      %c0_63 = arith.constant 0 : index
      %c0_64 = arith.constant 0 : index
      %194 = vector.load %arg10[%c0_63, %c0_64] : memref<32x32xf32, #tpu.memory_space<vmem>>, vector<32x32xf32>
      %cst_65 = arith.constant dense<0.000000e+00> : vector<8x32xf32>
      %195 = tpu.matmul %193, %194, %cst_65 {dimension_numbers = #tpu.dot_dimension_numbers<[1], [0], [0], [1], [0, 0, 1, 1], [], []>} : vector<8x32xf32>, vector<32x32xf32>, vector<8x32xf32> -> vector<8x32xf32>
      %196 = arith.addf %195, %11 : vector<8x32xf32>
      %cst_66 = arith.constant dense<0xFF800000> : vector<8xf32>
      %197 = vector.multi_reduction <maximumf>, %196, %cst_66 [1] : vector<8x32xf32> to vector<8xf32>
      %198 = vector.shape_cast %197 : vector<8xf32> to vector<8x1xf32>
      %199 = vector.broadcast %198 : vector<8x1xf32> to vector<8x32xf32>
      %200 = arith.subf %196, %199 : vector<8x32xf32>
      %201 = math.exp %200 : vector<8x32xf32>
      %cst_67 = arith.constant dense<0.000000e+00> : vector<8xf32>
      %202 = vector.multi_reduction <add>, %201, %cst_67 [1] : vector<8x32xf32> to vector<8xf32>
      %203 = vector.shape_cast %202 : vector<8xf32> to vector<8x1xf32>
      %cst_68 = arith.constant 1.000000e+00 : f32
      %204 = vector.broadcast %cst_68 : f32 to vector<8x1xf32>
      %205 = arith.divf %204, %203 : vector<8x1xf32>
      %206 = tpu.concatenate %173, %193 in 1 : vector<8x32xf32>, vector<8x32xf32> -> vector<8x64xf32>
      %c0_69 = arith.constant 0 : index
      %c0_70 = arith.constant 0 : index
      %207 = vector.load %arg6[%c0_69, %c0_70] : memref<64x384xf32, #tpu.memory_space<vmem>>, vector<64x384xf32>
      %cst_71 = arith.constant dense<0.000000e+00> : vector<8x384xf32>
      %208 = tpu.matmul %206, %207, %cst_71 {dimension_numbers = #tpu.dot_dimension_numbers<[1], [0], [0], [1], [0, 0, 1, 1], [], []>} : vector<8x64xf32>, vector<64x384xf32>, vector<8x384xf32> -> vector<8x384xf32>
      %209 = arith.addf %208, %5 : vector<8x384xf32>
      %c0_72 = arith.constant 0 : index
      %c0_73 = arith.constant 0 : index
      %210 = vector.load %arg4[%c0_72, %c0_73] : memref<32x256xf32, #tpu.memory_space<vmem>>, vector<32x256xf32>
      %cst_74 = arith.constant dense<0.000000e+00> : vector<8x256xf32>
      %211 = tpu.matmul %201, %210, %cst_74 {dimension_numbers = #tpu.dot_dimension_numbers<[1], [0], [0], [1], [0, 0, 1, 1], [], []>} : vector<8x32xf32>, vector<32x256xf32>, vector<8x256xf32> -> vector<8x256xf32>
      %212 = vector.broadcast %205 : vector<8x1xf32> to vector<8x256xf32>
      %213 = arith.mulf %211, %212 : vector<8x256xf32>
      %214 = arith.addf %213, %2 : vector<8x256xf32>
      %215 = vector.extract_strided_slice %214 {offsets = [0, 0], sizes = [8, 64], strides = [1, 1]} : vector<8x256xf32> to vector<8x64xf32>
      %216 = vector.extract_strided_slice %209 {offsets = [0, 0], sizes = [8, 64], strides = [1, 1]} : vector<8x384xf32> to vector<8x64xf32>
      %217 = arith.addf %215, %216 : vector<8x64xf32>
      %218 = vector.extract_strided_slice %214 {offsets = [0, 128], sizes = [8, 32], strides = [1, 1]} : vector<8x256xf32> to vector<8x32xf32>
      %219 = vector.extract_strided_slice %209 {offsets = [0, 128], sizes = [8, 32], strides = [1, 1]} : vector<8x384xf32> to vector<8x32xf32>
      %220 = arith.negf %217 : vector<8x64xf32>
      %221 = math.exp %220 : vector<8x64xf32>
      %cst_75 = arith.constant 1.000000e+00 : f32
      %222 = vector.broadcast %cst_75 : f32 to vector<8x64xf32>
      %223 = arith.addf %222, %221 : vector<8x64xf32>
      %224 = arith.divf %222, %223 : vector<8x64xf32>
      %225 = vector.extract_strided_slice %224 {offsets = [0, 0], sizes = [8, 32], strides = [1, 1]} : vector<8x64xf32> to vector<8x32xf32>
      %226 = vector.extract_strided_slice %224 {offsets = [0, 32], sizes = [8, 32], strides = [1, 1]} : vector<8x64xf32> to vector<8x32xf32>
      %227 = arith.mulf %225, %219 : vector<8x32xf32>
      %228 = arith.addf %218, %227 : vector<8x32xf32>
      %229 = math.tanh %228 : vector<8x32xf32>
      %230 = arith.subf %173, %229 : vector<8x32xf32>
      %231 = arith.mulf %226, %230 : vector<8x32xf32>
      %232 = arith.addf %229, %231 : vector<8x32xf32>
      %233 = tpu.concatenate %232, %193 in 1 : vector<8x32xf32>, vector<8x32xf32> -> vector<8x64xf32>
      %c0_76 = arith.constant 0 : index
      %c0_77 = arith.constant 0 : index
      %234 = vector.load %arg8[%c0_76, %c0_77] : memref<64x256xf32, #tpu.memory_space<vmem>>, vector<64x256xf32>
      %cst_78 = arith.constant dense<0.000000e+00> : vector<8x256xf32>
      %235 = tpu.matmul %233, %234, %cst_78 {dimension_numbers = #tpu.dot_dimension_numbers<[1], [0], [0], [1], [0, 0, 1, 1], [], []>} : vector<8x64xf32>, vector<64x256xf32>, vector<8x256xf32> -> vector<8x256xf32>
      %236 = arith.addf %235, %8 : vector<8x256xf32>
      %237 = vector.extract_strided_slice %236 {offsets = [0, 0], sizes = [8, 64], strides = [1, 1]} : vector<8x256xf32> to vector<8x64xf32>
      %238 = vector.extract_strided_slice %236 {offsets = [0, 128], sizes = [8, 32], strides = [1, 1]} : vector<8x256xf32> to vector<8x32xf32>
      %239 = vector.extract_strided_slice %209 {offsets = [0, 256], sizes = [8, 32], strides = [1, 1]} : vector<8x384xf32> to vector<8x32xf32>
      %240 = arith.negf %237 : vector<8x64xf32>
      %241 = math.exp %240 : vector<8x64xf32>
      %cst_79 = arith.constant 1.000000e+00 : f32
      %242 = vector.broadcast %cst_79 : f32 to vector<8x64xf32>
      %243 = arith.addf %242, %241 : vector<8x64xf32>
      %244 = arith.divf %242, %243 : vector<8x64xf32>
      %245 = vector.extract_strided_slice %244 {offsets = [0, 0], sizes = [8, 32], strides = [1, 1]} : vector<8x64xf32> to vector<8x32xf32>
      %246 = vector.extract_strided_slice %244 {offsets = [0, 32], sizes = [8, 32], strides = [1, 1]} : vector<8x64xf32> to vector<8x32xf32>
      %247 = arith.mulf %245, %239 : vector<8x32xf32>
      %248 = arith.addf %238, %247 : vector<8x32xf32>
      %249 = math.tanh %248 : vector<8x32xf32>
      %250 = arith.subf %193, %249 : vector<8x32xf32>
      %251 = arith.mulf %246, %250 : vector<8x32xf32>
      %252 = arith.addf %249, %251 : vector<8x32xf32>
      %c0_80 = arith.constant 0 : index
      %c0_81 = arith.constant 0 : index
      %253 = vector.load %arg10[%c0_80, %c0_81] : memref<32x32xf32, #tpu.memory_space<vmem>>, vector<32x32xf32>
      %cst_82 = arith.constant dense<0.000000e+00> : vector<8x32xf32>
      %254 = tpu.matmul %252, %253, %cst_82 {dimension_numbers = #tpu.dot_dimension_numbers<[1], [0], [0], [1], [0, 0, 1, 1], [], []>} : vector<8x32xf32>, vector<32x32xf32>, vector<8x32xf32> -> vector<8x32xf32>
      %255 = arith.addf %254, %11 : vector<8x32xf32>
      %cst_83 = arith.constant dense<0xFF800000> : vector<8xf32>
      %256 = vector.multi_reduction <maximumf>, %255, %cst_83 [1] : vector<8x32xf32> to vector<8xf32>
      %257 = vector.shape_cast %256 : vector<8xf32> to vector<8x1xf32>
      %258 = vector.broadcast %257 : vector<8x1xf32> to vector<8x32xf32>
      %259 = arith.subf %255, %258 : vector<8x32xf32>
      %260 = math.exp %259 : vector<8x32xf32>
      %cst_84 = arith.constant dense<0.000000e+00> : vector<8xf32>
      %261 = vector.multi_reduction <add>, %260, %cst_84 [1] : vector<8x32xf32> to vector<8xf32>
      %262 = vector.shape_cast %261 : vector<8xf32> to vector<8x1xf32>
      %cst_85 = arith.constant 1.000000e+00 : f32
      %263 = vector.broadcast %cst_85 : f32 to vector<8x1xf32>
      %264 = arith.divf %263, %262 : vector<8x1xf32>
      %265 = tpu.concatenate %78, %137, %196, %255 in 1 : vector<8x32xf32>, vector<8x32xf32>, vector<8x32xf32>, vector<8x32xf32> -> vector<8x128xf32>
      %266 = arith.index_cast %arg13 : i32 to index
      %c0_86 = arith.constant 0 : index
      %c0_87 = arith.constant 0 : index
      %267 = vector.load %arg12[%266, %c0_86, %c0_87] : memref<25x8x128xf32, #tpu.memory_space<vmem>>, vector<1x8x128xf32>
      %268 = vector.shape_cast %267 : vector<1x8x128xf32> to vector<8x128xf32>
      %269 = vector.shape_cast %265 : vector<8x128xf32> to vector<1x8x128xf32>
      tpu.vector_store %arg12[%266, %c0_86, %c0_87], %269 {strides = array<i32>} : memref<25x8x128xf32, #tpu.memory_space<vmem>>, vector<1x8x128xf32>,
      scf.yield %260, %264, %232, %252 : vector<8x32xf32>, vector<8x1xf32>, vector<8x32xf32>, vector<8x32xf32>
    }
    %c25_i32_17 = arith.constant 25 : i32
    return
  }
  func.func @transform_0(%arg0: i32) -> (i32, i32) {
    %c0_i32 = arith.constant 0 : i32
    %c0_i32_0 = arith.constant 0 : i32
    return %arg0, %c0_i32 : i32, i32
  }
  func.func @transform_1(%arg0: i32) -> (i32, i32) {
    %c0_i32 = arith.constant 0 : i32
    %c0_i32_0 = arith.constant 0 : i32
    %c0_i32_1 = arith.constant 0 : i32
    return %c0_i32, %c0_i32_0 : i32, i32
  }
  func.func @transform_2(%arg0: i32) -> (i32, i32) {
    %c0_i32 = arith.constant 0 : i32
    %c0_i32_0 = arith.constant 0 : i32
    %c0_i32_1 = arith.constant 0 : i32
    return %c0_i32, %c0_i32_0 : i32, i32
  }
  func.func @transform_3(%arg0: i32) -> (i32, i32) {
    %c0_i32 = arith.constant 0 : i32
    %c0_i32_0 = arith.constant 0 : i32
    %c0_i32_1 = arith.constant 0 : i32
    return %c0_i32, %c0_i32_0 : i32, i32
  }
  func.func @transform_4(%arg0: i32) -> (i32, i32) {
    %c0_i32 = arith.constant 0 : i32
    %c0_i32_0 = arith.constant 0 : i32
    %c0_i32_1 = arith.constant 0 : i32
    return %c0_i32, %c0_i32_0 : i32, i32
  }
  func.func @transform_5(%arg0: i32) -> (i32, i32) {
    %c0_i32 = arith.constant 0 : i32
    %c0_i32_0 = arith.constant 0 : i32
    %c0_i32_1 = arith.constant 0 : i32
    return %c0_i32, %c0_i32_0 : i32, i32
  }
  func.func @transform_6(%arg0: i32) -> (i32, i32) {
    %c0_i32 = arith.constant 0 : i32
    %c0_i32_0 = arith.constant 0 : i32
    %c0_i32_1 = arith.constant 0 : i32
    return %c0_i32, %c0_i32_0 : i32, i32
  }
  func.func @transform_7(%arg0: i32) -> (i32, i32) {
    %c0_i32 = arith.constant 0 : i32
    %c0_i32_0 = arith.constant 0 : i32
    %c0_i32_1 = arith.constant 0 : i32
    return %c0_i32, %c0_i32_0 : i32, i32
  }
  func.func @transform_8(%arg0: i32) -> (i32, i32) {
    %c0_i32 = arith.constant 0 : i32
    %c0_i32_0 = arith.constant 0 : i32
    %c0_i32_1 = arith.constant 0 : i32
    return %c0_i32, %c0_i32_0 : i32, i32
  }
  func.func @transform_9(%arg0: i32) -> (i32, i32) {
    %c0_i32 = arith.constant 0 : i32
    %c0_i32_0 = arith.constant 0 : i32
    %c0_i32_1 = arith.constant 0 : i32
    return %c0_i32, %c0_i32_0 : i32, i32
  }
  func.func @transform_10(%arg0: i32) -> (i32, i32) {
    %c0_i32 = arith.constant 0 : i32
    %c0_i32_0 = arith.constant 0 : i32
    %c0_i32_1 = arith.constant 0 : i32
    return %c0_i32, %c0_i32_0 : i32, i32
  }
  func.func @transform_11(%arg0: i32) -> (i32, i32, i32) {
    %c0_i32 = arith.constant 0 : i32
    %c0_i32_0 = arith.constant 0 : i32
    %c0_i32_1 = arith.constant 0 : i32
    return %c0_i32, %arg0, %c0_i32_0 : i32, i32, i32
  }
}

</mosaic_0001>

<llo_original>
// kernel: tpu_custom_call.1
$region0: #{tpu_custom_call.1}
  #allocation0 [shape = 'u32[]', space=smem, size = 0x4, offset = 0x4, fixed_abs, tag = 'smem constant byte address 0x4 - core index']
  #allocation1 [shape = 'u32[72,128]{1,0:T(1,128)}', space=vmem, size = 0x9000, scoped, tag = 'internal scratch']
  %s0 = inlined_call_operand.hbm [shape: f32[8,16], index: 0, kind: input, shape index: {}]
  %s1 = inlined_call_operand.hbm [shape: f32[16,32], index: 1, kind: input, shape index: {}]
  %s2 = inlined_call_operand.hbm [shape: f32[1,32], index: 2, kind: input, shape index: {}]
  %s3 = inlined_call_operand.hbm [shape: f32[32,256], index: 3, kind: input, shape index: {}]
  %s4 = inlined_call_operand.vmem [shape: f32[1,256], index: 4, kind: input, shape index: {}]
  %s5 = inlined_call_operand.hbm [shape: f32[64,384], index: 5, kind: input, shape index: {}]
  %s6 = inlined_call_operand.vmem [shape: f32[1,384], index: 6, kind: input, shape index: {}]
  %s7 = inlined_call_operand.hbm [shape: f32[64,256], index: 7, kind: input, shape index: {}]
  %s8 = inlined_call_operand.vmem [shape: f32[1,256], index: 8, kind: input, shape index: {}]
  %s9 = inlined_call_operand.hbm [shape: f32[32,32], index: 9, kind: input, shape index: {}]
  %s10 = inlined_call_operand.vmem [shape: f32[1,32], index: 10, kind: input, shape index: {}]
  %s11 = inlined_call_operand.hbm [shape: f32[25,8,128], index: 11, kind: output, shape index: {}]
  %s12 = sld [smem:[#allocation0]]
  $region89: #{tpu_custom_call.1} parent=0
    _
  %s14 = ssub.s32 1, %s12
  %s15 = scalar_select 0, %s14, %s12
  $region1: #{tpu_custom_call.1} parent=0
    #allocation2 [shape = 'u8[4096]{0}', space=vmem, size = 0x1000, scoped, tag = 'input window, operand 0, single buffered']
    #allocation3 [shape = 's32[1]{0}', space=sflag, size = 0x4, scoped, tag = 'scoped memory for tpu_custom_call.1']
    #allocation4 [shape = 's32[1]{0}', space=sflag, size = 0x4, scoped, tag = 'scoped memory for tpu_custom_call.1']
    #allocation5 [shape = 'u8[8192]{0}', space=vmem, size = 0x2000, scoped, tag = 'input window, operand 1, single buffered']
    #allocation6 [shape = 's32[1]{0}', space=sflag, size = 0x4, scoped, tag = 'scoped memory for tpu_custom_call.1']
    #allocation7 [shape = 'u8[512]{0}', space=vmem, size = 0x400, scoped, tag = 'input window, operand 2, single buffered']
    #allocation8 [shape = 'u8[32768]{0}', space=vmem, size = 0x8000, scoped, tag = 'input window, operand 3, single buffered']
    #allocation9 [shape = 's32[1]{0}', space=sflag, size = 0x4, scoped, tag = 'scoped memory for tpu_custom_call.1']
    #allocation10 [shape = 'u8[98304]{0}', space=vmem, size = 0x18000, scoped, tag = 'input window, operand 5, single buffered']
    #allocation11 [shape = 'u8[65536]{0}', space=vmem, size = 0x10000, scoped, tag = 'input window, operand 7, single buffered']
    #allocation12 [shape = 's32[1]{0}', space=sflag, size = 0x4, scoped, tag = 'scoped memory for tpu_custom_call.1']
    #allocation13 [shape = 'u8[16384]{0}', space=vmem, size = 0x4000, scoped, tag = 'input window, operand 9, single buffered']
    #allocation14 [shape = 'u8[102400]{0}', space=vmem, size = 0x19000, scoped, tag = 'output window, operand 0, single buffered']
    %16 = vsyncpa [#allocation3], 0
    %17 = vsyncpa [#allocation6], 0
    %18 = vsyncpa [#allocation9], 0
    %19 = vsyncpa [#allocation12], 0
    %20 = vsyncpa [#allocation4], 0
    // Predicated region
    $region2: #{tpu_custom_call.1} parent=1 // pred_check
      _
    $region3: #{tpu_custom_call.1} parent=1 // pred_check_branch
      %22 = sbr.rel (0) target = $region5
    $region4: #{tpu_custom_call.1} parent=1 // pred_region
      %24 = vsyncadd [#allocation3], 0
      %s26 = sshll.u32 %s0, 4
      %s27 = int_to_ptr.hbm [resolvable:$true] %s26
      %s28 = sshll.u32 [#allocation2], 4
      %s29 = int_to_ptr.vmem [resolvable:$true] %s28
      %31 = dma.hbm_to_vmem [thread:$0]  %s27, 128, %s29, [#allocation3]
    $region5: #{tpu_custom_call.1} parent=1 // pred_fallthru
      _
    // Predicated region
    $region6: #{tpu_custom_call.1} parent=1 // pred_check
      _
    $region7: #{tpu_custom_call.1} parent=1 // pred_check_branch
      %33 = sbr.rel (0) target = $region9
    $region8: #{tpu_custom_call.1} parent=1 // pred_region
      %35 = vsyncadd [#allocation6], 0
      %s36 = sshll.u32 %s1, 4
      %s37 = int_to_ptr.hbm [resolvable:$true] %s36
      %s38 = sshll.u32 [#allocation5], 4
      %s39 = int_to_ptr.vmem [resolvable:$true] %s38
      %44 = dma.hbm_to_vmem [thread:$0]  %s37, 256, %s39, [#allocation6], 128, 128, 8
    $region9: #{tpu_custom_call.1} parent=1 // pred_fallthru
      _
    // Predicated region
    $region10: #{tpu_custom_call.1} parent=1 // pred_check
      _
    $region11: #{tpu_custom_call.1} parent=1 // pred_check_branch
      %46 = sbr.rel (0) target = $region13
    $region12: #{tpu_custom_call.1} parent=1 // pred_region
      %48 = vsyncadd [#allocation6], 0
      %s50 = sshll.u32 %s2, 4
      %s51 = int_to_ptr.hbm [resolvable:$true] %s50
      %s52 = sshll.u32 [#allocation7], 4
      %s53 = int_to_ptr.vmem [resolvable:$true] %s52
      %55 = dma.hbm_to_vmem [thread:$0]  %s51, 16, %s53, [#allocation6]
    $region13: #{tpu_custom_call.1} parent=1 // pred_fallthru
      _
    // Predicated region
    $region14: #{tpu_custom_call.1} parent=1 // pred_check
      _
    $region15: #{tpu_custom_call.1} parent=1 // pred_check_branch
      %57 = sbr.rel (0) target = $region17
    $region16: #{tpu_custom_call.1} parent=1 // pred_region
      %59 = vsyncadd [#allocation9], 0
      %s60 = sshll.u32 %s3, 4
      %s61 = int_to_ptr.hbm [resolvable:$true] %s60
      %s62 = sshll.u32 [#allocation8], 4
      %s63 = int_to_ptr.vmem [resolvable:$true] %s62
      %68 = dma.hbm_to_vmem [thread:$0]  %s61, 1024, %s63, [#allocation9], 256, 256, 16
    $region17: #{tpu_custom_call.1} parent=1 // pred_fallthru
      _
    // Predicated region
    $region18: #{tpu_custom_call.1} parent=1 // pred_check
      _
    $region19: #{tpu_custom_call.1} parent=1 // pred_check_branch
      %70 = sbr.rel (0) target = $region21
    $region20: #{tpu_custom_call.1} parent=1 // pred_region
      _
    $region21: #{tpu_custom_call.1} parent=1 // pred_fallthru
      _
    // Predicated region
    $region22: #{tpu_custom_call.1} parent=1 // pred_check
      _
    $region23: #{tpu_custom_call.1} parent=1 // pred_check_branch
      %72 = sbr.rel (0) target = $region25
    $region24: #{tpu_custom_call.1} parent=1 // pred_region
      %74 = vsyncadd [#allocation9], 0
      %s75 = sshll.u32 %s5, 4
      %s76 = int_to_ptr.hbm [resolvable:$true] %s75
      %s77 = sshll.u32 [#allocation10], 4
      %s78 = int_to_ptr.vmem [resolvable:$true] %s77
      %83 = dma.hbm_to_vmem [thread:$0]  %s76, 3072, %s78, [#allocation9], 384, 384, 24
    $region25: #{tpu_custom_call.1} parent=1 // pred_fallthru
      _
    // Predicated region
    $region26: #{tpu_custom_call.1} parent=1 // pred_check
      _
    $region27: #{tpu_custom_call.1} parent=1 // pred_check_branch
      %85 = sbr.rel (0) target = $region29
    $region28: #{tpu_custom_call.1} parent=1 // pred_region
      _
    $region29: #{tpu_custom_call.1} parent=1 // pred_fallthru
      _
    // Predicated region
    $region30: #{tpu_custom_call.1} parent=1 // pred_check
      _
    $region31: #{tpu_custom_call.1} parent=1 // pred_check_branch
      %87 = sbr.rel (0) target = $region33
    $region32: #{tpu_custom_call.1} parent=1 // pred_region
      %89 = vsyncadd [#allocation12], 0
      %s90 = sshll.u32 %s7, 4
      %s91 = int_to_ptr.hbm [resolvable:$true] %s90
      %s92 = sshll.u32 [#allocation11], 4
      %s93 = int_to_ptr.vmem [resolvable:$true] %s92
      %98 = dma.hbm_to_vmem [thread:$0]  %s91, 2048, %s93, [#allocation12], 256, 256, 16
    $region33: #{tpu_custom_call.1} parent=1 // pred_fallthru
      _
    // Predicated region
    $region34: #{tpu_custom_call.1} parent=1 // pred_check
      _
    $region35: #{tpu_custom_call.1} parent=1 // pred_check_branch
      %100 = sbr.rel (0) target = $region37
    $region36: #{tpu_custom_call.1} parent=1 // pred_region
      _
    $region37: #{tpu_custom_call.1} parent=1 // pred_fallthru
      _
    // Predicated region
    $region38: #{tpu_custom_call.1} parent=1 // pred_check
      _
    $region39: #{tpu_custom_call.1} parent=1 // pred_check_branch
      %102 = sbr.rel (0) target = $region41
    $region40: #{tpu_custom_call.1} parent=1 // pred_region
      %104 = vsyncadd [#allocation12], 0
      %s105 = sshll.u32 %s9, 4
      %s106 = int_to_ptr.hbm [resolvable:$true] %s105
      %s107 = sshll.u32 [#allocation13], 4
      %s108 = int_to_ptr.vmem [resolvable:$true] %s107
      %113 = dma.hbm_to_vmem [thread:$0]  %s106, 512, %s108, [#allocation12], 128, 128, 8
    $region41: #{tpu_custom_call.1} parent=1 // pred_fallthru
      _
    // Predicated region
    $region42: #{tpu_custom_call.1} parent=1 // pred_check
      _
    $region43: #{tpu_custom_call.1} parent=1 // pred_check_branch
      %115 = sbr.rel (0) target = $region45
    $region44: #{tpu_custom_call.1} parent=1 // pred_region
      _
    $region45: #{tpu_custom_call.1} parent=1 // pred_fallthru
      _
    // Predicated region
    $region46: #{tpu_custom_call.1} parent=1 // pred_check
      _
    $region47: #{tpu_custom_call.1} parent=1 // pred_check_branch
      %117 = sbr.rel (0) target = $region49
    $region48: #{tpu_custom_call.1} parent=1 // pred_region
      %119 = dma.done [#allocation3], 128
    $region49: #{tpu_custom_call.1} parent=1 // pred_fallthru
      _
    // Predicated region
    $region50: #{tpu_custom_call.1} parent=1 // pred_check
      _
    $region51: #{tpu_custom_call.1} parent=1 // pred_check_branch
      %121 = sbr.rel (0) target = $region53
    $region52: #{tpu_custom_call.1} parent=1 // pred_region
      %123 = dma.done [#allocation6], 256
    $region53: #{tpu_custom_call.1} parent=1 // pred_fallthru
      _
    // Predicated region
    $region54: #{tpu_custom_call.1} parent=1 // pred_check
      _
    $region55: #{tpu_custom_call.1} parent=1 // pred_check_branch
      %125 = sbr.rel (0) target = $region57
    $region56: #{tpu_custom_call.1} parent=1 // pred_region
      %127 = dma.done [#allocation6], 16
    $region57: #{tpu_custom_call.1} parent=1 // pred_fallthru
      _
    // Predicated region
    $region58: #{tpu_custom_call.1} parent=1 // pred_check
      _
    $region59: #{tpu_custom_call.1} parent=1 // pred_check_branch
      %129 = sbr.rel (0) target = $region61
    $region60: #{tpu_custom_call.1} parent=1 // pred_region
      %131 = dma.done [#allocation9], 1024
    $region61: #{tpu_custom_call.1} parent=1 // pred_fallthru
      _
    // Predicated region
    $region62: #{tpu_custom_call.1} parent=1 // pred_check
      _
    $region63: #{tpu_custom_call.1} parent=1 // pred_check_branch
      %133 = sbr.rel (0) target = $region65
    $region64: #{tpu_custom_call.1} parent=1 // pred_region
      %135 = dma.done [#allocation9], 3072
    $region65: #{tpu_custom_call.1} parent=1 // pred_fallthru
      _
    // Predicated region
    $region66: #{tpu_custom_call.1} parent=1 // pred_check
      _
    $region67: #{tpu_custom_call.1} parent=1 // pred_check_branch
      %137 = sbr.rel (0) target = $region69
    $region68: #{tpu_custom_call.1} parent=1 // pred_region
      %139 = dma.done [#allocation12], 2048
    $region69: #{tpu_custom_call.1} parent=1 // pred_fallthru
      _
    // Predicated region
    $region70: #{tpu_custom_call.1} parent=1 // pred_check
      _
    $region71: #{tpu_custom_call.1} parent=1 // pred_check_branch
      %141 = sbr.rel (0) target = $region73
    $region72: #{tpu_custom_call.1} parent=1 // pred_region
      %143 = dma.done [#allocation12], 512
    $region73: #{tpu_custom_call.1} parent=1 // pred_fallthru
      _
    %v144 = vld [vmem:[%s4] sm:$0x3]
    %v146 = vperm.slane %v144, 0
    %v147 = vperm.slane %v144, 1
    %v150 = vld [vmem:[%s6] sm:$0x7]
    %v152 = vperm.slane %v150, 0
    %v153 = vperm.slane %v150, 1
    %v154 = vperm.slane %v150, 2
    %v158 = vld [vmem:[%s8] sm:$0x3]
    %v160 = vperm.slane %v158, 0
    %v161 = vperm.slane %v158, 1
    %v164 = vld [vmem:[%s10] sm:$0x1]
    %v166 = vperm.slane %v164, 0
    %v168 = vld [vmem:[#allocation2] sm:$0xff]
    %v169 = vld [vmem:[#allocation5] sm:$0xff]
    %v170 = vld [vmem:[#allocation5 + $0x8] sm:$0xff]
    %v171 = vld [vmem:[#allocation7] sm:$0x1]
    %v173 = vperm.slane %v171, 0
    %vm175 = vcmask 130048
    %v177 = vsel %vm175, %v168, 0
    %179 = vmatpush.msra.mxu0 0.0
    %180 = vmatpush.msra.mxu0 0.0
    %181 = vmatpush.msra.mxu0 0.0
    %182 = vmatpush.msra.mxu0 0.0
    %183 = vmatpush.msra.mxu0 0.0
    %184 = vmatpush.msra.mxu0 0.0
    %185 = vmatpush.msra.mxu0 0.0
    %186 = vmatpush.msra.mxu0 0.0
    %187 = vmatpush.msra.mxu0 0.0
    %188 = vmatpush.msra.mxu0 0.0
    %189 = vmatpush.msra.mxu0 0.0
    %190 = vmatpush.msra.mxu0 0.0
    %191 = vmatpush.msra.mxu0 0.0
    %192 = vmatpush.msra.mxu0 0.0
    %193 = vmatpush.msra.mxu0 %v170
    %194 = vmatpush.msra.mxu0 %v169
    %195 = vmatmul.f32.gmra.mxu0 %v177
    %v196 = vpop.f32.mrf.mxu0
    %v197 = vadd.f32 %v173, %v196
    %198 = vdwg.mxu0
    %v199 = vlaneseq
    %v200 = vand.u32 %v199, 127
    %vm201 = vcmp.eq.s32.totalorder %v200, 31
    %v202 = vsel %vm201, 1.0, 0.0
    loop: start=0, step=1, limit=25
    $region74: #{tpu_custom_call.1} parent=1 // loop_pre_header
      _
    $region75: #{tpu_custom_call.1} parent=1 // loop_header
      %s204 = sphi 0, %s208
      %p205 = scmp.ge.s32.totalorder %s204, 25
      %v209 = vphi %v202, %v1337
      %v210 = vphi 1.0, %v1355
      %v211 = vphi %v197, %v1231
      %v212 = vphi 0.0, %v1308
    $region76: #{tpu_custom_call.1} parent=1 // loop_header_branch
      %207 = sbr.rel (%p205) target = $region80
    $region77: #{tpu_custom_call.1} parent=1 // loop_body
      %214 = vrot.lane.b32.xlu0 %v212, 32
      %v215 = vpop.permute.xlu0 %214
      %vm217 = vcmask 261120
      %v218 = vsel %vm217, %v211, %v215
      %v219 = vld [vmem:[#allocation10] sm:$0xff]
      %v220 = vld [vmem:[#allocation10 + $0x8] sm:$0xff]
      %v221 = vld [vmem:[#allocation10 + $0x10] sm:$0xff]
      %v222 = vld [vmem:[#allocation10 + $0x18] sm:$0xff]
      %v223 = vld [vmem:[#allocation10 + $0x20] sm:$0xff]
      %v224 = vld [vmem:[#allocation10 + $0x28] sm:$0xff]
      %v225 = vld [vmem:[#allocation10 + $0x30] sm:$0xff]
      %v226 = vld [vmem:[#allocation10 + $0x38] sm:$0xff]
      %v227 = vld [vmem:[#allocation10 + $0x40] sm:$0xff]
      %v228 = vld [vmem:[#allocation10 + $0x48] sm:$0xff]
      %v229 = vld [vmem:[#allocation10 + $0x50] sm:$0xff]
      %v230 = vld [vmem:[#allocation10 + $0x58] sm:$0xff]
      %v231 = vld [vmem:[#allocation10 + $0x60] sm:$0xff]
      %v232 = vld [vmem:[#allocation10 + $0x68] sm:$0xff]
      %v233 = vld [vmem:[#allocation10 + $0x70] sm:$0xff]
      %v234 = vld [vmem:[#allocation10 + $0x78] sm:$0xff]
      %v235 = vld [vmem:[#allocation10 + $0x80] sm:$0xff]
      %v236 = vld [vmem:[#allocation10 + $0x88] sm:$0xff]
      %v237 = vld [vmem:[#allocation10 + $0x90] sm:$0xff]
      %v238 = vld [vmem:[#allocation10 + $0x98] sm:$0xff]
      %v239 = vld [vmem:[#allocation10 + $0xa0] sm:$0xff]
      %v240 = vld [vmem:[#allocation10 + $0xa8] sm:$0xff]
      %v241 = vld [vmem:[#allocation10 + $0xb0] sm:$0xff]
      %v242 = vld [vmem:[#allocation10 + $0xb8] sm:$0xff]
      %vm243 = vcmask 523264
      %v245 = vsel %vm243, %v218, 0
      %247 = vmatpush.msra.mxu0 0.0
      %248 = vmatpush.msra.mxu0 0.0
      %249 = vmatpush.msra.mxu0 0.0
      %250 = vmatpush.msra.mxu0 0.0
      %251 = vmatpush.msra.mxu0 0.0
      %252 = vmatpush.msra.mxu0 0.0
      %253 = vmatpush.msra.mxu0 0.0
      %254 = vmatpush.msra.mxu0 0.0
      %255 = vmatpush.msra.mxu0 %v240
      %256 = vmatpush.msra.mxu0 %v237
      %257 = vmatpush.msra.mxu0 %v234
      %258 = vmatpush.msra.mxu0 %v231
      %259 = vmatpush.msra.mxu0 %v228
      %260 = vmatpush.msra.mxu0 %v225
      %261 = vmatpush.msra.mxu0 %v222
      %262 = vmatpush.msra.mxu0 %v219
      %263 = vmatmul.f32.gmra.mxu0 %v245
      %v264 = vpop.f32.mrf.mxu0
      %v265 = vadd.f32 %v152, %v264
      %266 = vdwg.mxu0
      %267 = vmatpush.msra.mxu0 0.0
      %268 = vmatpush.msra.mxu0 0.0
      %269 = vmatpush.msra.mxu0 0.0
      %270 = vmatpush.msra.mxu0 0.0
      %271 = vmatpush.msra.mxu0 0.0
      %272 = vmatpush.msra.mxu0 0.0
      %273 = vmatpush.msra.mxu0 0.0
      %274 = vmatpush.msra.mxu0 0.0
      %275 = vmatpush.msra.mxu0 %v241
      %276 = vmatpush.msra.mxu0 %v238
      %277 = vmatpush.msra.mxu0 %v235
      %278 = vmatpush.msra.mxu0 %v232
      %279 = vmatpush.msra.mxu0 %v229
      %280 = vmatpush.msra.mxu0 %v226
      %281 = vmatpush.msra.mxu0 %v223
      %282 = vmatpush.msra.mxu0 %v220
      %283 = vmatmul.f32.gmra.mxu0 %v245
      %v284 = vpop.f32.mrf.mxu0
      %v285 = vadd.f32 %v153, %v284
      %286 = vdwg.mxu0
      %287 = vmatpush.msra.mxu0 0.0
      %288 = vmatpush.msra.mxu0 0.0
      %289 = vmatpush.msra.mxu0 0.0
      %290 = vmatpush.msra.mxu0 0.0
      %291 = vmatpush.msra.mxu0 0.0
      %292 = vmatpush.msra.mxu0 0.0
      %293 = vmatpush.msra.mxu0 0.0
      %294 = vmatpush.msra.mxu0 0.0
      %295 = vmatpush.msra.mxu0 %v242
      %296 = vmatpush.msra.mxu0 %v239
      %297 = vmatpush.msra.mxu0 %v236
      %298 = vmatpush.msra.mxu0 %v233
      %299 = vmatpush.msra.mxu0 %v230
      %300 = vmatpush.msra.mxu0 %v227
      %301 = vmatpush.msra.mxu0 %v224
      %302 = vmatpush.msra.mxu0 %v221
      %303 = vmatmul.f32.gmra.mxu0 %v245
      %v304 = vpop.f32.mrf.mxu0
      %v305 = vadd.f32 %v154, %v304
      %306 = vdwg.mxu0
      %v307 = vld [vmem:[#allocation8] sm:$0xff]
      %v308 = vld [vmem:[#allocation8 + $0x8] sm:$0xff]
      %v309 = vld [vmem:[#allocation8 + $0x10] sm:$0xff]
      %v310 = vld [vmem:[#allocation8 + $0x18] sm:$0xff]
      %v311 = vld [vmem:[#allocation8 + $0x20] sm:$0xff]
      %v312 = vld [vmem:[#allocation8 + $0x28] sm:$0xff]
      %v313 = vld [vmem:[#allocation8 + $0x30] sm:$0xff]
      %v314 = vld [vmem:[#allocation8 + $0x38] sm:$0xff]
      %v316 = vsel %vm217, %v209, 0
      %318 = vmatpush.msra.mxu0 0.0
      %319 = vmatpush.msra.mxu0 0.0
      %320 = vmatpush.msra.mxu0 0.0
      %321 = vmatpush.msra.mxu0 0.0
      %322 = vmatpush.msra.mxu0 0.0
      %323 = vmatpush.msra.mxu0 0.0
      %324 = vmatpush.msra.mxu0 0.0
      %325 = vmatpush.msra.mxu0 0.0
      %326 = vmatpush.msra.mxu0 0.0
      %327 = vmatpush.msra.mxu0 0.0
      %328 = vmatpush.msra.mxu0 0.0
      %329 = vmatpush.msra.mxu0 0.0
      %330 = vmatpush.msra.mxu0 %v313
      %331 = vmatpush.msra.mxu0 %v311
      %332 = vmatpush.msra.mxu0 %v309
      %333 = vmatpush.msra.mxu0 %v307
      %334 = vmatmul.f32.gmra.mxu0 %v316
      %v335 = vpop.f32.mrf.mxu0
      %v336 = vadd.f32 0.0, %v335
      %337 = vdwg.mxu0
      %338 = vmatpush.msra.mxu0 0.0
      %339 = vmatpush.msra.mxu0 0.0
      %340 = vmatpush.msra.mxu0 0.0
      %341 = vmatpush.msra.mxu0 0.0
      %342 = vmatpush.msra.mxu0 0.0
      %343 = vmatpush.msra.mxu0 0.0
      %344 = vmatpush.msra.mxu0 0.0
      %345 = vmatpush.msra.mxu0 0.0
      %346 = vmatpush.msra.mxu0 0.0
      %347 = vmatpush.msra.mxu0 0.0
      %348 = vmatpush.msra.mxu0 0.0
      %349 = vmatpush.msra.mxu0 0.0
      %350 = vmatpush.msra.mxu0 %v314
      %351 = vmatpush.msra.mxu0 %v312
      %352 = vmatpush.msra.mxu0 %v310
      %353 = vmatpush.msra.mxu0 %v308
      %354 = vmatmul.f32.gmra.mxu0 %v316
      %v355 = vpop.f32.mrf.mxu0
      %v356 = vadd.f32 0.0, %v355
      %357 = vdwg.mxu0
      %v358 = vmul.f32 %v336, %v210
      %v359 = vmul.f32 %v356, %v210
      %v360 = vadd.f32 %v358, %v146
      %v361 = vadd.f32 %v359, %v147
      %v362 = vadd.f32 %v360, %v265
      %v363 = vxor.u32 %v362, 2147483648
      %v364 = vmul.f32 %v363, 1.442695
      %v365 = vpow.pop %v364
      %v366 = vadd.f32 %v365, 1.0
      %v367 = vrcp.pop %v366
      %v368 = vmul.f32 %v366, %v367
      %v369 = vsub.f32 1.0, %v368
      %v370 = vmul.f32 %v367, %v369
      %v371 = vadd.f32 %v367, %v370
      %vm372 = vweird.f32 %v366
      %vm373 = vweird.f32 %v367
      %vm374 = vmor %vm372, %vm373
      %v375 = vsel %vm374, %v367, %v371
      %v376 = vand.u32 2147483647, %v366
      %vm377 = vcmp.eq.f32.partialorder %v376, 8.507059e+37
      %v378 = vand.u32 %v366, 2147483648
      %v379 = vor.u32 1.1754944e-38, %v378
      %v380 = vsel %vm377, %v379, %v375
      %v381 = vmul.f32 1.0, %v380
      %v382 = vmul.f32 %v381, %v285
      %v383 = vadd.f32 %v361, %v382
      %v384 = vtanh.pop %v383
      %v385 = vsub.f32 %v211, %v384
      %387 = vrot.lane.b32.xlu0 %v385, 32
      %v388 = vpop.permute.xlu0 %387
      %v390 = vmul.f32 %v381, %v388
      %392 = vrot.lane.b32.xlu0 %v390, 96
      %v393 = vpop.permute.xlu0 %392
      %v395 = vadd.f32 %v384, %v393
      %v396 = vsel %vm217, %v395, %v215
      %v397 = vld [vmem:[#allocation11] sm:$0xff]
      %v398 = vld [vmem:[#allocation11 + $0x8] sm:$0xff]
      %v399 = vld [vmem:[#allocation11 + $0x10] sm:$0xff]
      %v400 = vld [vmem:[#allocation11 + $0x18] sm:$0xff]
      %v401 = vld [vmem:[#allocation11 + $0x20] sm:$0xff]
      %v402 = vld [vmem:[#allocation11 + $0x28] sm:$0xff]
      %v403 = vld [vmem:[#allocation11 + $0x30] sm:$0xff]
      %v404 = vld [vmem:[#allocation11 + $0x38] sm:$0xff]
      %v405 = vld [vmem:[#allocation11 + $0x40] sm:$0xff]
      %v406 = vld [vmem:[#allocation11 + $0x48] sm:$0xff]
      %v407 = vld [vmem:[#allocation11 + $0x50] sm:$0xff]
      %v408 = vld [vmem:[#allocation11 + $0x58] sm:$0xff]
      %v409 = vld [vmem:[#allocation11 + $0x60] sm:$0xff]
      %v410 = vld [vmem:[#allocation11 + $0x68] sm:$0xff]
      %v411 = vld [vmem:[#allocation11 + $0x70] sm:$0xff]
      %v412 = vld [vmem:[#allocation11 + $0x78] sm:$0xff]
      %v414 = vsel %vm243, %v396, 0
      %416 = vmatpush.msra.mxu0 0.0
      %417 = vmatpush.msra.mxu0 0.0
      %418 = vmatpush.msra.mxu0 0.0
      %419 = vmatpush.msra.mxu0 0.0
      %420 = vmatpush.msra.mxu0 0.0
      %421 = vmatpush.msra.mxu0 0.0
      %422 = vmatpush.msra.mxu0 0.0
      %423 = vmatpush.msra.mxu0 0.0
      %424 = vmatpush.msra.mxu0 %v411
      %425 = vmatpush.msra.mxu0 %v409
      %426 = vmatpush.msra.mxu0 %v407
      %427 = vmatpush.msra.mxu0 %v405
      %428 = vmatpush.msra.mxu0 %v403
      %429 = vmatpush.msra.mxu0 %v401
      %430 = vmatpush.msra.mxu0 %v399
      %431 = vmatpush.msra.mxu0 %v397
      %432 = vmatmul.f32.gmra.mxu0 %v414
      %v433 = vpop.f32.mrf.mxu0
      %v434 = vadd.f32 %v160, %v433
      %435 = vdwg.mxu0
      %436 = vmatpush.msra.mxu0 0.0
      %437 = vmatpush.msra.mxu0 0.0
      %438 = vmatpush.msra.mxu0 0.0
      %439 = vmatpush.msra.mxu0 0.0
      %440 = vmatpush.msra.mxu0 0.0
      %441 = vmatpush.msra.mxu0 0.0
      %442 = vmatpush.msra.mxu0 0.0
      %443 = vmatpush.msra.mxu0 0.0
      %444 = vmatpush.msra.mxu0 %v412
      %445 = vmatpush.msra.mxu0 %v410
      %446 = vmatpush.msra.mxu0 %v408
      %447 = vmatpush.msra.mxu0 %v406
      %448 = vmatpush.msra.mxu0 %v404
      %449 = vmatpush.msra.mxu0 %v402
      %450 = vmatpush.msra.mxu0 %v400
      %451 = vmatpush.msra.mxu0 %v398
      %452 = vmatmul.f32.gmra.mxu0 %v414
      %v453 = vpop.f32.mrf.mxu0
      %v454 = vadd.f32 %v161, %v453
      %455 = vdwg.mxu0
      %v456 = vxor.u32 %v434, 2147483648
      %v457 = vmul.f32 %v456, 1.442695
      %v458 = vpow.pop %v457
      %v459 = vadd.f32 %v458, 1.0
      %v460 = vrcp.pop %v459
      %v461 = vmul.f32 %v459, %v460
      %v462 = vsub.f32 1.0, %v461
      %v463 = vmul.f32 %v460, %v462
      %v464 = vadd.f32 %v460, %v463
      %vm465 = vweird.f32 %v459
      %vm466 = vweird.f32 %v460
      %vm467 = vmor %vm465, %vm466
      %v468 = vsel %vm467, %v460, %v464
      %v469 = vand.u32 2147483647, %v459
      %vm470 = vcmp.eq.f32.partialorder %v469, 8.507059e+37
      %v471 = vand.u32 %v459, 2147483648
      %v472 = vor.u32 1.1754944e-38, %v471
      %v473 = vsel %vm470, %v472, %v468
      %v474 = vmul.f32 1.0, %v473
      %v475 = vmul.f32 %v474, %v305
      %v476 = vadd.f32 %v454, %v475
      %v477 = vtanh.pop %v476
      %v478 = vsub.f32 %v212, %v477
      %480 = vrot.lane.b32.xlu0 %v478, 32
      %v481 = vpop.permute.xlu0 %480
      %v483 = vmul.f32 %v474, %v481
      %485 = vrot.lane.b32.xlu0 %v483, 96
      %v486 = vpop.permute.xlu0 %485
      %v488 = vadd.f32 %v477, %v486
      %v489 = vld [vmem:[#allocation13] sm:$0xff]
      %v490 = vld [vmem:[#allocation13 + $0x8] sm:$0xff]
      %v491 = vld [vmem:[#allocation13 + $0x10] sm:$0xff]
      %v492 = vld [vmem:[#allocation13 + $0x18] sm:$0xff]
      %v494 = vsel %vm217, %v488, 0
      %496 = vmatpush.msra.mxu0 0.0
      %497 = vmatpush.msra.mxu0 0.0
      %498 = vmatpush.msra.mxu0 0.0
      %499 = vmatpush.msra.mxu0 0.0
      %500 = vmatpush.msra.mxu0 0.0
      %501 = vmatpush.msra.mxu0 0.0
      %502 = vmatpush.msra.mxu0 0.0
      %503 = vmatpush.msra.mxu0 0.0
      %504 = vmatpush.msra.mxu0 0.0
      %505 = vmatpush.msra.mxu0 0.0
      %506 = vmatpush.msra.mxu0 0.0
      %507 = vmatpush.msra.mxu0 0.0
      %508 = vmatpush.msra.mxu0 %v492
      %509 = vmatpush.msra.mxu0 %v491
      %510 = vmatpush.msra.mxu0 %v490
      %511 = vmatpush.msra.mxu0 %v489
      %512 = vmatmul.f32.gmra.mxu0 %v494
      %v513 = vpop.f32.mrf.mxu0
      %v514 = vadd.f32 %v166, %v513
      %515 = vdwg.mxu0
      %v516 = vsel %vm217, %v514, -inf
      %517 = vmax.xlane.f32.xlu0 %v516
      %v518 = vpop.xlane.xlu0 %517
      %v519 = vsub.f32 %v514, %v518
      %v520 = vmul.f32 %v519, 1.442695
      %v521 = vpow.pop %v520
      %v522 = vsel %vm217, %v521, 0.0
      %523 = vadd.xlane.f32.xlu0 %v522
      %v524 = vpop.xlane.xlu0 %523
      %v525 = vrcp.pop %v524
      %v526 = vmul.f32 %v524, %v525
      %v527 = vsub.f32 1.0, %v526
      %v528 = vmul.f32 %v525, %v527
      %v529 = vadd.f32 %v525, %v528
      %vm530 = vweird.f32 %v524
      %vm531 = vweird.f32 %v525
      %vm532 = vmor %vm530, %vm531
      %v533 = vsel %vm532, %v525, %v529
      %v534 = vand.u32 2147483647, %v524
      %vm535 = vcmp.eq.f32.partialorder %v534, 8.507059e+37
      %v536 = vand.u32 %v524, 2147483648
      %v537 = vor.u32 1.1754944e-38, %v536
      %v538 = vsel %vm535, %v537, %v533
      %v539 = vmul.f32 1.0, %v538
      %540 = vrot.lane.b32.xlu0 %v488, 32
      %v541 = vpop.permute.xlu0 %540
      %v543 = vsel %vm217, %v395, %v541
      %v545 = vsel %vm243, %v543, 0
      %547 = vmatpush.msra.mxu0 0.0
      %548 = vmatpush.msra.mxu0 0.0
      %549 = vmatpush.msra.mxu0 0.0
      %550 = vmatpush.msra.mxu0 0.0
      %551 = vmatpush.msra.mxu0 0.0
      %552 = vmatpush.msra.mxu0 0.0
      %553 = vmatpush.msra.mxu0 0.0
      %554 = vmatpush.msra.mxu0 0.0
      %555 = vmatpush.msra.mxu0 %v240
      %556 = vmatpush.msra.mxu0 %v237
      %557 = vmatpush.msra.mxu0 %v234
      %558 = vmatpush.msra.mxu0 %v231
      %559 = vmatpush.msra.mxu0 %v228
      %560 = vmatpush.msra.mxu0 %v225
      %561 = vmatpush.msra.mxu0 %v222
      %562 = vmatpush.msra.mxu0 %v219
      %563 = vmatmul.f32.gmra.mxu0 %v545
      %v564 = vpop.f32.mrf.mxu0
      %v565 = vadd.f32 %v152, %v564
      %566 = vdwg.mxu0
      %567 = vmatpush.msra.mxu0 0.0
      %568 = vmatpush.msra.mxu0 0.0
      %569 = vmatpush.msra.mxu0 0.0
      %570 = vmatpush.msra.mxu0 0.0
      %571 = vmatpush.msra.mxu0 0.0
      %572 = vmatpush.msra.mxu0 0.0
      %573 = vmatpush.msra.mxu0 0.0
      %574 = vmatpush.msra.mxu0 0.0
      %575 = vmatpush.msra.mxu0 %v241
      %576 = vmatpush.msra.mxu0 %v238
      %577 = vmatpush.msra.mxu0 %v235
      %578 = vmatpush.msra.mxu0 %v232
      %579 = vmatpush.msra.mxu0 %v229
      %580 = vmatpush.msra.mxu0 %v226
      %581 = vmatpush.msra.mxu0 %v223
      %582 = vmatpush.msra.mxu0 %v220
      %583 = vmatmul.f32.gmra.mxu0 %v545
      %v584 = vpop.f32.mrf.mxu0
      %v585 = vadd.f32 %v153, %v584
      %586 = vdwg.mxu0
      %587 = vmatpush.msra.mxu0 0.0
      %588 = vmatpush.msra.mxu0 0.0
      %589 = vmatpush.msra.mxu0 0.0
      %590 = vmatpush.msra.mxu0 0.0
      %591 = vmatpush.msra.mxu0 0.0
      %592 = vmatpush.msra.mxu0 0.0
      %593 = vmatpush.msra.mxu0 0.0
      %594 = vmatpush.msra.mxu0 0.0
      %595 = vmatpush.msra.mxu0 %v242
      %596 = vmatpush.msra.mxu0 %v239
      %597 = vmatpush.msra.mxu0 %v236
      %598 = vmatpush.msra.mxu0 %v233
      %599 = vmatpush.msra.mxu0 %v230
      %600 = vmatpush.msra.mxu0 %v227
      %601 = vmatpush.msra.mxu0 %v224
      %602 = vmatpush.msra.mxu0 %v221
      %603 = vmatmul.f32.gmra.mxu0 %v545
      %v604 = vpop.f32.mrf.mxu0
      %v605 = vadd.f32 %v154, %v604
      %606 = vdwg.mxu0
      %v608 = vsel %vm217, %v521, 0
      %610 = vmatpush.msra.mxu0 0.0
      %611 = vmatpush.msra.mxu0 0.0
      %612 = vmatpush.msra.mxu0 0.0
      %613 = vmatpush.msra.mxu0 0.0
      %614 = vmatpush.msra.mxu0 0.0
      %615 = vmatpush.msra.mxu0 0.0
      %616 = vmatpush.msra.mxu0 0.0
      %617 = vmatpush.msra.mxu0 0.0
      %618 = vmatpush.msra.mxu0 0.0
      %619 = vmatpush.msra.mxu0 0.0
      %620 = vmatpush.msra.mxu0 0.0
      %621 = vmatpush.msra.mxu0 0.0
      %622 = vmatpush.msra.mxu0 %v313
      %623 = vmatpush.msra.mxu0 %v311
      %624 = vmatpush.msra.mxu0 %v309
      %625 = vmatpush.msra.mxu0 %v307
      %626 = vmatmul.f32.gmra.mxu0 %v608
      %v627 = vpop.f32.mrf.mxu0
      %v628 = vadd.f32 0.0, %v627
      %629 = vdwg.mxu0
      %630 = vmatpush.msra.mxu0 0.0
      %631 = vmatpush.msra.mxu0 0.0
      %632 = vmatpush.msra.mxu0 0.0
      %633 = vmatpush.msra.mxu0 0.0
      %634 = vmatpush.msra.mxu0 0.0
      %635 = vmatpush.msra.mxu0 0.0
      %636 = vmatpush.msra.mxu0 0.0
      %637 = vmatpush.msra.mxu0 0.0
      %638 = vmatpush.msra.mxu0 0.0
      %639 = vmatpush.msra.mxu0 0.0
      %640 = vmatpush.msra.mxu0 0.0
      %641 = vmatpush.msra.mxu0 0.0
      %642 = vmatpush.msra.mxu0 %v314
      %643 = vmatpush.msra.mxu0 %v312
      %644 = vmatpush.msra.mxu0 %v310
      %645 = vmatpush.msra.mxu0 %v308
      %646 = vmatmul.f32.gmra.mxu0 %v608
      %v647 = vpop.f32.mrf.mxu0
      %v648 = vadd.f32 0.0, %v647
      %649 = vdwg.mxu0
      %v650 = vmul.f32 %v628, %v539
      %v651 = vmul.f32 %v648, %v539
      %v652 = vadd.f32 %v650, %v146
      %v653 = vadd.f32 %v651, %v147
      %v654 = vadd.f32 %v652, %v565
      %v655 = vxor.u32 %v654, 2147483648
      %v656 = vmul.f32 %v655, 1.442695
      %v657 = vpow.pop %v656
      %v658 = vadd.f32 %v657, 1.0
      %v659 = vrcp.pop %v658
      %v660 = vmul.f32 %v658, %v659
      %v661 = vsub.f32 1.0, %v660
      %v662 = vmul.f32 %v659, %v661
      %v663 = vadd.f32 %v659, %v662
      %vm664 = vweird.f32 %v658
      %vm665 = vweird.f32 %v659
      %vm666 = vmor %vm664, %vm665
      %v667 = vsel %vm666, %v659, %v663
      %v668 = vand.u32 2147483647, %v658
      %vm669 = vcmp.eq.f32.partialorder %v668, 8.507059e+37
      %v670 = vand.u32 %v658, 2147483648
      %v671 = vor.u32 1.1754944e-38, %v670
      %v672 = vsel %vm669, %v671, %v667
      %v673 = vmul.f32 1.0, %v672
      %v674 = vmul.f32 %v673, %v585
      %v675 = vadd.f32 %v653, %v674
      %v676 = vtanh.pop %v675
      %v677 = vsub.f32 %v395, %v676
      %679 = vrot.lane.b32.xlu0 %v677, 32
      %v680 = vpop.permute.xlu0 %679
      %v682 = vmul.f32 %v673, %v680
      %684 = vrot.lane.b32.xlu0 %v682, 96
      %v685 = vpop.permute.xlu0 %684
      %v687 = vadd.f32 %v676, %v685
      %v688 = vsel %vm217, %v687, %v541
      %v690 = vsel %vm243, %v688, 0
      %692 = vmatpush.msra.mxu0 0.0
      %693 = vmatpush.msra.mxu0 0.0
      %694 = vmatpush.msra.mxu0 0.0
      %695 = vmatpush.msra.mxu0 0.0
      %696 = vmatpush.msra.mxu0 0.0
      %697 = vmatpush.msra.mxu0 0.0
      %698 = vmatpush.msra.mxu0 0.0
      %699 = vmatpush.msra.mxu0 0.0
      %700 = vmatpush.msra.mxu0 %v411
      %701 = vmatpush.msra.mxu0 %v409
      %702 = vmatpush.msra.mxu0 %v407
      %703 = vmatpush.msra.mxu0 %v405
      %704 = vmatpush.msra.mxu0 %v403
      %705 = vmatpush.msra.mxu0 %v401
      %706 = vmatpush.msra.mxu0 %v399
      %707 = vmatpush.msra.mxu0 %v397
      %708 = vmatmul.f32.gmra.mxu0 %v690
      %v709 = vpop.f32.mrf.mxu0
      %v710 = vadd.f32 %v160, %v709
      %711 = vdwg.mxu0
      %712 = vmatpush.msra.mxu0 0.0
      %713 = vmatpush.msra.mxu0 0.0
      %714 = vmatpush.msra.mxu0 0.0
      %715 = vmatpush.msra.mxu0 0.0
      %716 = vmatpush.msra.mxu0 0.0
      %717 = vmatpush.msra.mxu0 0.0
      %718 = vmatpush.msra.mxu0 0.0
      %719 = vmatpush.msra.mxu0 0.0
      %720 = vmatpush.msra.mxu0 %v412
      %721 = vmatpush.msra.mxu0 %v410
      %722 = vmatpush.msra.mxu0 %v408
      %723 = vmatpush.msra.mxu0 %v406
      %724 = vmatpush.msra.mxu0 %v404
      %725 = vmatpush.msra.mxu0 %v402
      %726 = vmatpush.msra.mxu0 %v400
      %727 = vmatpush.msra.mxu0 %v398
      %728 = vmatmul.f32.gmra.mxu0 %v690
      %v729 = vpop.f32.mrf.mxu0
      %v730 = vadd.f32 %v161, %v729
      %731 = vdwg.mxu0
      %v732 = vxor.u32 %v710, 2147483648
      %v733 = vmul.f32 %v732, 1.442695
      %v734 = vpow.pop %v733
      %v735 = vadd.f32 %v734, 1.0
      %v736 = vrcp.pop %v735
      %v737 = vmul.f32 %v735, %v736
      %v738 = vsub.f32 1.0, %v737
      %v739 = vmul.f32 %v736, %v738
      %v740 = vadd.f32 %v736, %v739
      %vm741 = vweird.f32 %v735
      %vm742 = vweird.f32 %v736
      %vm743 = vmor %vm741, %vm742
      %v744 = vsel %vm743, %v736, %v740
      %v745 = vand.u32 2147483647, %v735
      %vm746 = vcmp.eq.f32.partialorder %v745, 8.507059e+37
      %v747 = vand.u32 %v735, 2147483648
      %v748 = vor.u32 1.1754944e-38, %v747
      %v749 = vsel %vm746, %v748, %v744
      %v750 = vmul.f32 1.0, %v749
      %v751 = vmul.f32 %v750, %v605
      %v752 = vadd.f32 %v730, %v751
      %v753 = vtanh.pop %v752
      %v754 = vsub.f32 %v488, %v753
      %756 = vrot.lane.b32.xlu0 %v754, 32
      %v757 = vpop.permute.xlu0 %756
      %v759 = vmul.f32 %v750, %v757
      %761 = vrot.lane.b32.xlu0 %v759, 96
      %v762 = vpop.permute.xlu0 %761
      %v764 = vadd.f32 %v753, %v762
      %v766 = vsel %vm217, %v764, 0
      %768 = vmatpush.msra.mxu0 0.0
      %769 = vmatpush.msra.mxu0 0.0
      %770 = vmatpush.msra.mxu0 0.0
      %771 = vmatpush.msra.mxu0 0.0
      %772 = vmatpush.msra.mxu0 0.0
      %773 = vmatpush.msra.mxu0 0.0
      %774 = vmatpush.msra.mxu0 0.0
      %775 = vmatpush.msra.mxu0 0.0
      %776 = vmatpush.msra.mxu0 0.0
      %777 = vmatpush.msra.mxu0 0.0
      %778 = vmatpush.msra.mxu0 0.0
      %779 = vmatpush.msra.mxu0 0.0
      %780 = vmatpush.msra.mxu0 %v492
      %781 = vmatpush.msra.mxu0 %v491
      %782 = vmatpush.msra.mxu0 %v490
      %783 = vmatpush.msra.mxu0 %v489
      %784 = vmatmul.f32.gmra.mxu0 %v766
      %v785 = vpop.f32.mrf.mxu0
      %v786 = vadd.f32 %v166, %v785
      %787 = vdwg.mxu0
      %v788 = vsel %vm217, %v786, -inf
      %789 = vmax.xlane.f32.xlu0 %v788
      %v790 = vpop.xlane.xlu0 %789
      %v791 = vsub.f32 %v786, %v790
      %v792 = vmul.f32 %v791, 1.442695
      %v793 = vpow.pop %v792
      %v794 = vsel %vm217, %v793, 0.0
      %795 = vadd.xlane.f32.xlu0 %v794
      %v796 = vpop.xlane.xlu0 %795
      %v797 = vrcp.pop %v796
      %v798 = vmul.f32 %v796, %v797
      %v799 = vsub.f32 1.0, %v798
      %v800 = vmul.f32 %v797, %v799
      %v801 = vadd.f32 %v797, %v800
      %vm802 = vweird.f32 %v796
      %vm803 = vweird.f32 %v797
      %vm804 = vmor %vm802, %vm803
      %v805 = vsel %vm804, %v797, %v801
      %v806 = vand.u32 2147483647, %v796
      %vm807 = vcmp.eq.f32.partialorder %v806, 8.507059e+37
      %v808 = vand.u32 %v796, 2147483648
      %v809 = vor.u32 1.1754944e-38, %v808
      %v810 = vsel %vm807, %v809, %v805
      %v811 = vmul.f32 1.0, %v810
      %812 = vrot.lane.b32.xlu0 %v764, 32
      %v813 = vpop.permute.xlu0 %812
      %v815 = vsel %vm217, %v687, %v813
      %v817 = vsel %vm243, %v815, 0
      %819 = vmatpush.msra.mxu0 0.0
      %820 = vmatpush.msra.mxu0 0.0
      %821 = vmatpush.msra.mxu0 0.0
      %822 = vmatpush.msra.mxu0 0.0
      %823 = vmatpush.msra.mxu0 0.0
      %824 = vmatpush.msra.mxu0 0.0
      %825 = vmatpush.msra.mxu0 0.0
      %826 = vmatpush.msra.mxu0 0.0
      %827 = vmatpush.msra.mxu0 %v240
      %828 = vmatpush.msra.mxu0 %v237
      %829 = vmatpush.msra.mxu0 %v234
      %830 = vmatpush.msra.mxu0 %v231
      %831 = vmatpush.msra.mxu0 %v228
      %832 = vmatpush.msra.mxu0 %v225
      %833 = vmatpush.msra.mxu0 %v222
      %834 = vmatpush.msra.mxu0 %v219
      %835 = vmatmul.f32.gmra.mxu0 %v817
      %v836 = vpop.f32.mrf.mxu0
      %v837 = vadd.f32 %v152, %v836
      %838 = vdwg.mxu0
      %839 = vmatpush.msra.mxu0 0.0
      %840 = vmatpush.msra.mxu0 0.0
      %841 = vmatpush.msra.mxu0 0.0
      %842 = vmatpush.msra.mxu0 0.0
      %843 = vmatpush.msra.mxu0 0.0
      %844 = vmatpush.msra.mxu0 0.0
      %845 = vmatpush.msra.mxu0 0.0
      %846 = vmatpush.msra.mxu0 0.0
      %847 = vmatpush.msra.mxu0 %v241
      %848 = vmatpush.msra.mxu0 %v238
      %849 = vmatpush.msra.mxu0 %v235
      %850 = vmatpush.msra.mxu0 %v232
      %851 = vmatpush.msra.mxu0 %v229
      %852 = vmatpush.msra.mxu0 %v226
      %853 = vmatpush.msra.mxu0 %v223
      %854 = vmatpush.msra.mxu0 %v220
      %855 = vmatmul.f32.gmra.mxu0 %v817
      %v856 = vpop.f32.mrf.mxu0
      %v857 = vadd.f32 %v153, %v856
      %858 = vdwg.mxu0
      %859 = vmatpush.msra.mxu0 0.0
      %860 = vmatpush.msra.mxu0 0.0
      %861 = vmatpush.msra.mxu0 0.0
      %862 = vmatpush.msra.mxu0 0.0
      %863 = vmatpush.msra.mxu0 0.0
      %864 = vmatpush.msra.mxu0 0.0
      %865 = vmatpush.msra.mxu0 0.0
      %866 = vmatpush.msra.mxu0 0.0
      %867 = vmatpush.msra.mxu0 %v242
      %868 = vmatpush.msra.mxu0 %v239
      %869 = vmatpush.msra.mxu0 %v236
      %870 = vmatpush.msra.mxu0 %v233
      %871 = vmatpush.msra.mxu0 %v230
      %872 = vmatpush.msra.mxu0 %v227
      %873 = vmatpush.msra.mxu0 %v224
      %874 = vmatpush.msra.mxu0 %v221
      %875 = vmatmul.f32.gmra.mxu0 %v817
      %v876 = vpop.f32.mrf.mxu0
      %v877 = vadd.f32 %v154, %v876
      %878 = vdwg.mxu0
      %v880 = vsel %vm217, %v793, 0
      %882 = vmatpush.msra.mxu0 0.0
      %883 = vmatpush.msra.mxu0 0.0
      %884 = vmatpush.msra.mxu0 0.0
      %885 = vmatpush.msra.mxu0 0.0
      %886 = vmatpush.msra.mxu0 0.0
      %887 = vmatpush.msra.mxu0 0.0
      %888 = vmatpush.msra.mxu0 0.0
      %889 = vmatpush.msra.mxu0 0.0
      %890 = vmatpush.msra.mxu0 0.0
      %891 = vmatpush.msra.mxu0 0.0
      %892 = vmatpush.msra.mxu0 0.0
      %893 = vmatpush.msra.mxu0 0.0
      %894 = vmatpush.msra.mxu0 %v313
      %895 = vmatpush.msra.mxu0 %v311
      %896 = vmatpush.msra.mxu0 %v309
      %897 = vmatpush.msra.mxu0 %v307
      %898 = vmatmul.f32.gmra.mxu0 %v880
      %v899 = vpop.f32.mrf.mxu0
      %v900 = vadd.f32 0.0, %v899
      %901 = vdwg.mxu0
      %902 = vmatpush.msra.mxu0 0.0
      %903 = vmatpush.msra.mxu0 0.0
      %904 = vmatpush.msra.mxu0 0.0
      %905 = vmatpush.msra.mxu0 0.0
      %906 = vmatpush.msra.mxu0 0.0
      %907 = vmatpush.msra.mxu0 0.0
      %908 = vmatpush.msra.mxu0 0.0
      %909 = vmatpush.msra.mxu0 0.0
      %910 = vmatpush.msra.mxu0 0.0
      %911 = vmatpush.msra.mxu0 0.0
      %912 = vmatpush.msra.mxu0 0.0
      %913 = vmatpush.msra.mxu0 0.0
      %914 = vmatpush.msra.mxu0 %v314
      %915 = vmatpush.msra.mxu0 %v312
      %916 = vmatpush.msra.mxu0 %v310
      %917 = vmatpush.msra.mxu0 %v308
      %918 = vmatmul.f32.gmra.mxu0 %v880
      %v919 = vpop.f32.mrf.mxu0
      %v920 = vadd.f32 0.0, %v919
      %921 = vdwg.mxu0
      %v922 = vmul.f32 %v900, %v811
      %v923 = vmul.f32 %v920, %v811
      %v924 = vadd.f32 %v922, %v146
      %v925 = vadd.f32 %v923, %v147
      %v926 = vadd.f32 %v924, %v837
      %v927 = vxor.u32 %v926, 2147483648
      %v928 = vmul.f32 %v927, 1.442695
      %v929 = vpow.pop %v928
      %v930 = vadd.f32 %v929, 1.0
      %v931 = vrcp.pop %v930
      %v932 = vmul.f32 %v930, %v931
      %v933 = vsub.f32 1.0, %v932
      %v934 = vmul.f32 %v931, %v933
      %v935 = vadd.f32 %v931, %v934
      %vm936 = vweird.f32 %v930
      %vm937 = vweird.f32 %v931
      %vm938 = vmor %vm936, %vm937
      %v939 = vsel %vm938, %v931, %v935
      %v940 = vand.u32 2147483647, %v930
      %vm941 = vcmp.eq.f32.partialorder %v940, 8.507059e+37
      %v942 = vand.u32 %v930, 2147483648
      %v943 = vor.u32 1.1754944e-38, %v942
      %v944 = vsel %vm941, %v943, %v939
      %v945 = vmul.f32 1.0, %v944
      %v946 = vmul.f32 %v945, %v857
      %v947 = vadd.f32 %v925, %v946
      %v948 = vtanh.pop %v947
      %v949 = vsub.f32 %v687, %v948
      %951 = vrot.lane.b32.xlu0 %v949, 32
      %v952 = vpop.permute.xlu0 %951
      %v954 = vmul.f32 %v945, %v952
      %956 = vrot.lane.b32.xlu0 %v954, 96
      %v957 = vpop.permute.xlu0 %956
      %v959 = vadd.f32 %v948, %v957
      %v960 = vsel %vm217, %v959, %v813
      %v962 = vsel %vm243, %v960, 0
      %964 = vmatpush.msra.mxu0 0.0
      %965 = vmatpush.msra.mxu0 0.0
      %966 = vmatpush.msra.mxu0 0.0
      %967 = vmatpush.msra.mxu0 0.0
      %968 = vmatpush.msra.mxu0 0.0
      %969 = vmatpush.msra.mxu0 0.0
      %970 = vmatpush.msra.mxu0 0.0
      %971 = vmatpush.msra.mxu0 0.0
      %972 = vmatpush.msra.mxu0 %v411
      %973 = vmatpush.msra.mxu0 %v409
      %974 = vmatpush.msra.mxu0 %v407
      %975 = vmatpush.msra.mxu0 %v405
      %976 = vmatpush.msra.mxu0 %v403
      %977 = vmatpush.msra.mxu0 %v401
      %978 = vmatpush.msra.mxu0 %v399
      %979 = vmatpush.msra.mxu0 %v397
      %980 = vmatmul.f32.gmra.mxu0 %v962
      %v981 = vpop.f32.mrf.mxu0
      %v982 = vadd.f32 %v160, %v981
      %983 = vdwg.mxu0
      %984 = vmatpush.msra.mxu0 0.0
      %985 = vmatpush.msra.mxu0 0.0
      %986 = vmatpush.msra.mxu0 0.0
      %987 = vmatpush.msra.mxu0 0.0
      %988 = vmatpush.msra.mxu0 0.0
      %989 = vmatpush.msra.mxu0 0.0
      %990 = vmatpush.msra.mxu0 0.0
      %991 = vmatpush.msra.mxu0 0.0
      %992 = vmatpush.msra.mxu0 %v412
      %993 = vmatpush.msra.mxu0 %v410
      %994 = vmatpush.msra.mxu0 %v408
      %995 = vmatpush.msra.mxu0 %v406
      %996 = vmatpush.msra.mxu0 %v404
      %997 = vmatpush.msra.mxu0 %v402
      %998 = vmatpush.msra.mxu0 %v400
      %999 = vmatpush.msra.mxu0 %v398
      %1000 = vmatmul.f32.gmra.mxu0 %v962
      %v1001 = vpop.f32.mrf.mxu0
      %v1002 = vadd.f32 %v161, %v1001
      %1003 = vdwg.mxu0
      %v1004 = vxor.u32 %v982, 2147483648
      %v1005 = vmul.f32 %v1004, 1.442695
      %v1006 = vpow.pop %v1005
      %v1007 = vadd.f32 %v1006, 1.0
      %v1008 = vrcp.pop %v1007
      %v1009 = vmul.f32 %v1007, %v1008
      %v1010 = vsub.f32 1.0, %v1009
      %v1011 = vmul.f32 %v1008, %v1010
      %v1012 = vadd.f32 %v1008, %v1011
      %vm1013 = vweird.f32 %v1007
      %vm1014 = vweird.f32 %v1008
      %vm1015 = vmor %vm1013, %vm1014
      %v1016 = vsel %vm1015, %v1008, %v1012
      %v1017 = vand.u32 2147483647, %v1007
      %vm1018 = vcmp.eq.f32.partialorder %v1017, 8.507059e+37
      %v1019 = vand.u32 %v1007, 2147483648
      %v1020 = vor.u32 1.1754944e-38, %v1019
      %v1021 = vsel %vm1018, %v1020, %v1016
      %v1022 = vmul.f32 1.0, %v1021
      %v1023 = vmul.f32 %v1022, %v877
      %v1024 = vadd.f32 %v1002, %v1023
      %v1025 = vtanh.pop %v1024
      %v1026 = vsub.f32 %v764, %v1025
      %1028 = vrot.lane.b32.xlu0 %v1026, 32
      %v1029 = vpop.permute.xlu0 %1028
      %v1031 = vmul.f32 %v1022, %v1029
      %1033 = vrot.lane.b32.xlu0 %v1031, 96
      %v1034 = vpop.permute.xlu0 %1033
      %v1036 = vadd.f32 %v1025, %v1034
      %v1038 = vsel %vm217, %v1036, 0
      %1040 = vmatpush.msra.mxu0 0.0
      %1041 = vmatpush.msra.mxu0 0.0
      %1042 = vmatpush.msra.mxu0 0.0
      %1043 = vmatpush.msra.mxu0 0.0
      %1044 = vmatpush.msra.mxu0 0.0
      %1045 = vmatpush.msra.mxu0 0.0
      %1046 = vmatpush.msra.mxu0 0.0
      %1047 = vmatpush.msra.mxu0 0.0
      %1048 = vmatpush.msra.mxu0 0.0
      %1049 = vmatpush.msra.mxu0 0.0
      %1050 = vmatpush.msra.mxu0 0.0
      %1051 = vmatpush.msra.mxu0 0.0
      %1052 = vmatpush.msra.mxu0 %v492
      %1053 = vmatpush.msra.mxu0 %v491
      %1054 = vmatpush.msra.mxu0 %v490
      %1055 = vmatpush.msra.mxu0 %v489
      %1056 = vmatmul.f32.gmra.mxu0 %v1038
      %v1057 = vpop.f32.mrf.mxu0
      %v1058 = vadd.f32 %v166, %v1057
      %1059 = vdwg.mxu0
      %v1060 = vsel %vm217, %v1058, -inf
      %1061 = vmax.xlane.f32.xlu0 %v1060
      %v1062 = vpop.xlane.xlu0 %1061
      %v1063 = vsub.f32 %v1058, %v1062
      %v1064 = vmul.f32 %v1063, 1.442695
      %v1065 = vpow.pop %v1064
      %v1066 = vsel %vm217, %v1065, 0.0
      %1067 = vadd.xlane.f32.xlu0 %v1066
      %v1068 = vpop.xlane.xlu0 %1067
      %v1069 = vrcp.pop %v1068
      %v1070 = vmul.f32 %v1068, %v1069
      %v1071 = vsub.f32 1.0, %v1070
      %v1072 = vmul.f32 %v1069, %v1071
      %v1073 = vadd.f32 %v1069, %v1072
      %vm1074 = vweird.f32 %v1068
      %vm1075 = vweird.f32 %v1069
      %vm1076 = vmor %vm1074, %vm1075
      %v1077 = vsel %vm1076, %v1069, %v1073
      %v1078 = vand.u32 2147483647, %v1068
      %vm1079 = vcmp.eq.f32.partialorder %v1078, 8.507059e+37
      %v1080 = vand.u32 %v1068, 2147483648
      %v1081 = vor.u32 1.1754944e-38, %v1080
      %v1082 = vsel %vm1079, %v1081, %v1077
      %v1083 = vmul.f32 1.0, %v1082
      %1084 = vrot.lane.b32.xlu0 %v1036, 32
      %v1085 = vpop.permute.xlu0 %1084
      %v1087 = vsel %vm217, %v959, %v1085
      %v1089 = vsel %vm243, %v1087, 0
      %1091 = vmatpush.msra.mxu0 0.0
      %1092 = vmatpush.msra.mxu0 0.0
      %1093 = vmatpush.msra.mxu0 0.0
      %1094 = vmatpush.msra.mxu0 0.0
      %1095 = vmatpush.msra.mxu0 0.0
      %1096 = vmatpush.msra.mxu0 0.0
      %1097 = vmatpush.msra.mxu0 0.0
      %1098 = vmatpush.msra.mxu0 0.0
      %1099 = vmatpush.msra.mxu0 %v240
      %1100 = vmatpush.msra.mxu0 %v237
      %1101 = vmatpush.msra.mxu0 %v234
      %1102 = vmatpush.msra.mxu0 %v231
      %1103 = vmatpush.msra.mxu0 %v228
      %1104 = vmatpush.msra.mxu0 %v225
      %1105 = vmatpush.msra.mxu0 %v222
      %1106 = vmatpush.msra.mxu0 %v219
      %1107 = vmatmul.f32.gmra.mxu0 %v1089
      %v1108 = vpop.f32.mrf.mxu0
      %v1109 = vadd.f32 %v152, %v1108
      %1110 = vdwg.mxu0
      %1111 = vmatpush.msra.mxu0 0.0
      %1112 = vmatpush.msra.mxu0 0.0
      %1113 = vmatpush.msra.mxu0 0.0
      %1114 = vmatpush.msra.mxu0 0.0
      %1115 = vmatpush.msra.mxu0 0.0
      %1116 = vmatpush.msra.mxu0 0.0
      %1117 = vmatpush.msra.mxu0 0.0
      %1118 = vmatpush.msra.mxu0 0.0
      %1119 = vmatpush.msra.mxu0 %v241
      %1120 = vmatpush.msra.mxu0 %v238
      %1121 = vmatpush.msra.mxu0 %v235
      %1122 = vmatpush.msra.mxu0 %v232
      %1123 = vmatpush.msra.mxu0 %v229
      %1124 = vmatpush.msra.mxu0 %v226
      %1125 = vmatpush.msra.mxu0 %v223
      %1126 = vmatpush.msra.mxu0 %v220
      %1127 = vmatmul.f32.gmra.mxu0 %v1089
      %v1128 = vpop.f32.mrf.mxu0
      %v1129 = vadd.f32 %v153, %v1128
      %1130 = vdwg.mxu0
      %1131 = vmatpush.msra.mxu0 0.0
      %1132 = vmatpush.msra.mxu0 0.0
      %1133 = vmatpush.msra.mxu0 0.0
      %1134 = vmatpush.msra.mxu0 0.0
      %1135 = vmatpush.msra.mxu0 0.0
      %1136 = vmatpush.msra.mxu0 0.0
      %1137 = vmatpush.msra.mxu0 0.0
      %1138 = vmatpush.msra.mxu0 0.0
      %1139 = vmatpush.msra.mxu0 %v242
      %1140 = vmatpush.msra.mxu0 %v239
      %1141 = vmatpush.msra.mxu0 %v236
      %1142 = vmatpush.msra.mxu0 %v233
      %1143 = vmatpush.msra.mxu0 %v230
      %1144 = vmatpush.msra.mxu0 %v227
      %1145 = vmatpush.msra.mxu0 %v224
      %1146 = vmatpush.msra.mxu0 %v221
      %1147 = vmatmul.f32.gmra.mxu0 %v1089
      %v1148 = vpop.f32.mrf.mxu0
      %v1149 = vadd.f32 %v154, %v1148
      %1150 = vdwg.mxu0
      %v1152 = vsel %vm217, %v1065, 0
      %1154 = vmatpush.msra.mxu0 0.0
      %1155 = vmatpush.msra.mxu0 0.0
      %1156 = vmatpush.msra.mxu0 0.0
      %1157 = vmatpush.msra.mxu0 0.0
      %1158 = vmatpush.msra.mxu0 0.0
      %1159 = vmatpush.msra.mxu0 0.0
      %1160 = vmatpush.msra.mxu0 0.0
      %1161 = vmatpush.msra.mxu0 0.0
      %1162 = vmatpush.msra.mxu0 0.0
      %1163 = vmatpush.msra.mxu0 0.0
      %1164 = vmatpush.msra.mxu0 0.0
      %1165 = vmatpush.msra.mxu0 0.0
      %1166 = vmatpush.msra.mxu0 %v313
      %1167 = vmatpush.msra.mxu0 %v311
      %1168 = vmatpush.msra.mxu0 %v309
      %1169 = vmatpush.msra.mxu0 %v307
      %1170 = vmatmul.f32.gmra.mxu0 %v1152
      %v1171 = vpop.f32.mrf.mxu0
      %v1172 = vadd.f32 0.0, %v1171
      %1173 = vdwg.mxu0
      %1174 = vmatpush.msra.mxu0 0.0
      %1175 = vmatpush.msra.mxu0 0.0
      %1176 = vmatpush.msra.mxu0 0.0
      %1177 = vmatpush.msra.mxu0 0.0
      %1178 = vmatpush.msra.mxu0 0.0
      %1179 = vmatpush.msra.mxu0 0.0
      %1180 = vmatpush.msra.mxu0 0.0
      %1181 = vmatpush.msra.mxu0 0.0
      %1182 = vmatpush.msra.mxu0 0.0
      %1183 = vmatpush.msra.mxu0 0.0
      %1184 = vmatpush.msra.mxu0 0.0
      %1185 = vmatpush.msra.mxu0 0.0
      %1186 = vmatpush.msra.mxu0 %v314
      %1187 = vmatpush.msra.mxu0 %v312
      %1188 = vmatpush.msra.mxu0 %v310
      %1189 = vmatpush.msra.mxu0 %v308
      %1190 = vmatmul.f32.gmra.mxu0 %v1152
      %v1191 = vpop.f32.mrf.mxu0
      %v1192 = vadd.f32 0.0, %v1191
      %1193 = vdwg.mxu0
      %v1194 = vmul.f32 %v1172, %v1083
      %v1195 = vmul.f32 %v1192, %v1083
      %v1196 = vadd.f32 %v1194, %v146
      %v1197 = vadd.f32 %v1195, %v147
      %v1198 = vadd.f32 %v1196, %v1109
      %v1199 = vxor.u32 %v1198, 2147483648
      %v1200 = vmul.f32 %v1199, 1.442695
      %v1201 = vpow.pop %v1200
      %v1202 = vadd.f32 %v1201, 1.0
      %v1203 = vrcp.pop %v1202
      %v1204 = vmul.f32 %v1202, %v1203
      %v1205 = vsub.f32 1.0, %v1204
      %v1206 = vmul.f32 %v1203, %v1205
      %v1207 = vadd.f32 %v1203, %v1206
      %vm1208 = vweird.f32 %v1202
      %vm1209 = vweird.f32 %v1203
      %vm1210 = vmor %vm1208, %vm1209
      %v1211 = vsel %vm1210, %v1203, %v1207
      %v1212 = vand.u32 2147483647, %v1202
      %vm1213 = vcmp.eq.f32.partialorder %v1212, 8.507059e+37
      %v1214 = vand.u32 %v1202, 2147483648
      %v1215 = vor.u32 1.1754944e-38, %v1214
      %v1216 = vsel %vm1213, %v1215, %v1211
      %v1217 = vmul.f32 1.0, %v1216
      %v1218 = vmul.f32 %v1217, %v1129
      %v1219 = vadd.f32 %v1197, %v1218
      %v1220 = vtanh.pop %v1219
      %v1221 = vsub.f32 %v959, %v1220
      %1223 = vrot.lane.b32.xlu0 %v1221, 32
      %v1224 = vpop.permute.xlu0 %1223
      %v1226 = vmul.f32 %v1217, %v1224
      %1228 = vrot.lane.b32.xlu0 %v1226, 96
      %v1229 = vpop.permute.xlu0 %1228
      %v1231 = vadd.f32 %v1220, %v1229
      %v1232 = vsel %vm217, %v1231, %v1085
      %v1234 = vsel %vm243, %v1232, 0
      %1236 = vmatpush.msra.mxu0 0.0
      %1237 = vmatpush.msra.mxu0 0.0
      %1238 = vmatpush.msra.mxu0 0.0
      %1239 = vmatpush.msra.mxu0 0.0
      %1240 = vmatpush.msra.mxu0 0.0
      %1241 = vmatpush.msra.mxu0 0.0
      %1242 = vmatpush.msra.mxu0 0.0
      %1243 = vmatpush.msra.mxu0 0.0
      %1244 = vmatpush.msra.mxu0 %v411
      %1245 = vmatpush.msra.mxu0 %v409
      %1246 = vmatpush.msra.mxu0 %v407
      %1247 = vmatpush.msra.mxu0 %v405
      %1248 = vmatpush.msra.mxu0 %v403
      %1249 = vmatpush.msra.mxu0 %v401
      %1250 = vmatpush.msra.mxu0 %v399
      %1251 = vmatpush.msra.mxu0 %v397
      %1252 = vmatmul.f32.gmra.mxu0 %v1234
      %v1253 = vpop.f32.mrf.mxu0
      %v1254 = vadd.f32 %v160, %v1253
      %1255 = vdwg.mxu0
      %1256 = vmatpush.msra.mxu0 0.0
      %1257 = vmatpush.msra.mxu0 0.0
      %1258 = vmatpush.msra.mxu0 0.0
      %1259 = vmatpush.msra.mxu0 0.0
      %1260 = vmatpush.msra.mxu0 0.0
      %1261 = vmatpush.msra.mxu0 0.0
      %1262 = vmatpush.msra.mxu0 0.0
      %1263 = vmatpush.msra.mxu0 0.0
      %1264 = vmatpush.msra.mxu0 %v412
      %1265 = vmatpush.msra.mxu0 %v410
      %1266 = vmatpush.msra.mxu0 %v408
      %1267 = vmatpush.msra.mxu0 %v406
      %1268 = vmatpush.msra.mxu0 %v404
      %1269 = vmatpush.msra.mxu0 %v402
      %1270 = vmatpush.msra.mxu0 %v400
      %1271 = vmatpush.msra.mxu0 %v398
      %1272 = vmatmul.f32.gmra.mxu0 %v1234
      %v1273 = vpop.f32.mrf.mxu0
      %v1274 = vadd.f32 %v161, %v1273
      %1275 = vdwg.mxu0
      %v1276 = vxor.u32 %v1254, 2147483648
      %v1277 = vmul.f32 %v1276, 1.442695
      %v1278 = vpow.pop %v1277
      %v1279 = vadd.f32 %v1278, 1.0
      %v1280 = vrcp.pop %v1279
      %v1281 = vmul.f32 %v1279, %v1280
      %v1282 = vsub.f32 1.0, %v1281
      %v1283 = vmul.f32 %v1280, %v1282
      %v1284 = vadd.f32 %v1280, %v1283
      %vm1285 = vweird.f32 %v1279
      %vm1286 = vweird.f32 %v1280
      %vm1287 = vmor %vm1285, %vm1286
      %v1288 = vsel %vm1287, %v1280, %v1284
      %v1289 = vand.u32 2147483647, %v1279
      %vm1290 = vcmp.eq.f32.partialorder %v1289, 8.507059e+37
      %v1291 = vand.u32 %v1279, 2147483648
      %v1292 = vor.u32 1.1754944e-38, %v1291
      %v1293 = vsel %vm1290, %v1292, %v1288
      %v1294 = vmul.f32 1.0, %v1293
      %v1295 = vmul.f32 %v1294, %v1149
      %v1296 = vadd.f32 %v1274, %v1295
      %v1297 = vtanh.pop %v1296
      %v1298 = vsub.f32 %v1036, %v1297
      %1300 = vrot.lane.b32.xlu0 %v1298, 32
      %v1301 = vpop.permute.xlu0 %1300
      %v1303 = vmul.f32 %v1294, %v1301
      %1305 = vrot.lane.b32.xlu0 %v1303, 96
      %v1306 = vpop.permute.xlu0 %1305
      %v1308 = vadd.f32 %v1297, %v1306
      %v1310 = vsel %vm217, %v1308, 0
      %1312 = vmatpush.msra.mxu0 0.0
      %1313 = vmatpush.msra.mxu0 0.0
      %1314 = vmatpush.msra.mxu0 0.0
      %1315 = vmatpush.msra.mxu0 0.0
      %1316 = vmatpush.msra.mxu0 0.0
      %1317 = vmatpush.msra.mxu0 0.0
      %1318 = vmatpush.msra.mxu0 0.0
      %1319 = vmatpush.msra.mxu0 0.0
      %1320 = vmatpush.msra.mxu0 0.0
      %1321 = vmatpush.msra.mxu0 0.0
      %1322 = vmatpush.msra.mxu0 0.0
      %1323 = vmatpush.msra.mxu0 0.0
      %1324 = vmatpush.msra.mxu0 %v492
      %1325 = vmatpush.msra.mxu0 %v491
      %1326 = vmatpush.msra.mxu0 %v490
      %1327 = vmatpush.msra.mxu0 %v489
      %1328 = vmatmul.f32.gmra.mxu0 %v1310
      %v1329 = vpop.f32.mrf.mxu0
      %v1330 = vadd.f32 %v166, %v1329
      %1331 = vdwg.mxu0
      %v1332 = vsel %vm217, %v1330, -inf
      %1333 = vmax.xlane.f32.xlu0 %v1332
      %v1334 = vpop.xlane.xlu0 %1333
      %v1335 = vsub.f32 %v1330, %v1334
      %v1336 = vmul.f32 %v1335, 1.442695
      %v1337 = vpow.pop %v1336
      %v1338 = vsel %vm217, %v1337, 0.0
      %1339 = vadd.xlane.f32.xlu0 %v1338
      %v1340 = vpop.xlane.xlu0 %1339
      %v1341 = vrcp.pop %v1340
      %v1342 = vmul.f32 %v1340, %v1341
      %v1343 = vsub.f32 1.0, %v1342
      %v1344 = vmul.f32 %v1341, %v1343
      %v1345 = vadd.f32 %v1341, %v1344
      %vm1346 = vweird.f32 %v1340
      %vm1347 = vweird.f32 %v1341
      %vm1348 = vmor %vm1346, %vm1347
      %v1349 = vsel %vm1348, %v1341, %v1345
      %v1350 = vand.u32 2147483647, %v1340
      %vm1351 = vcmp.eq.f32.partialorder %v1350, 8.507059e+37
      %v1352 = vand.u32 %v1340, 2147483648
      %v1353 = vor.u32 1.1754944e-38, %v1352
      %v1354 = vsel %vm1351, %v1353, %v1349
      %v1355 = vmul.f32 1.0, %v1354
      %1357 = vrot.lane.b32.xlu0 %v786, 32
      %v1358 = vpop.permute.xlu0 %1357
      %1361 = vrot.lane.b32.xlu0 %v1058, 64
      %v1362 = vpop.permute.xlu0 %1361
      %1365 = vrot.lane.b32.xlu0 %v1330, 96
      %v1366 = vpop.permute.xlu0 %1365
      %v1368 = vsel %vm217, %v514, %v1358
      %v1369 = vsel %vm243, %v1368, %v1362
      %vm1370 = vcmask 785408
      %v1371 = vsel %vm1370, %v1369, %v1366
      %s1372 = smul.u32 %s204, 8
      %s1373 = scalar_lea.vmem [#allocation14], %s1372
      %1374 = vst [vmem:[%s1373] sm:$0xff] %v1371
    $region78: #{tpu_custom_call.1} parent=1 // loop_footer
      %s208 = sadd.s32 1, %s204
    $region79: #{tpu_custom_call.1} parent=1 // loop_footer_branch
      %203 = sbr.rel target = $region75
    $region80: #{tpu_custom_call.1} parent=1 // loop_exit
      _
    // Predicated region
    $region81: #{tpu_custom_call.1} parent=1 // pred_check
      _
    $region82: #{tpu_custom_call.1} parent=1 // pred_check_branch
      %1376 = sbr.rel (0) target = $region84
    $region83: #{tpu_custom_call.1} parent=1 // pred_region
      %1378 = vsyncadd [#allocation4], 0
      %s1379 = sshll.u32 [#allocation14], 4
      %s1380 = int_to_ptr.vmem [resolvable:$true] %s1379
      %s1381 = sshll.u32 %s11, 4
      %s1382 = int_to_ptr.hbm [resolvable:$true] %s1381
      %1387 = dma.vmem_to_hbm [thread:$0]  %s1380, 3200, %s1382, [#allocation4], 128, 128, 8
    $region84: #{tpu_custom_call.1} parent=1 // pred_fallthru
      _
    // Predicated region
    $region85: #{tpu_custom_call.1} parent=1 // pred_check
      _
    $region86: #{tpu_custom_call.1} parent=1 // pred_check_branch
      %1389 = sbr.rel (0) target = $region88
    $region87: #{tpu_custom_call.1} parent=1 // pred_region
      %1391 = dma.done [#allocation4], 3200
    $region88: #{tpu_custom_call.1} parent=1 // pred_fallthru
      _
    %1392 = vsyncpa [#allocation3], 1
    %1393 = vsyncpa [#allocation6], 1
    %1394 = vsyncpa [#allocation9], 1
    %1395 = vsyncpa [#allocation12], 1
    %1396 = vsyncpa [#allocation4], 1

</llo_original>
